<compile_context>
chip_gen: v6e
topology: v6e:2x2x1
jax: 0.10.0
libtpu: 0.0.40
codegen_flags: <defaults>
</compile_context>

<pallas_src>
import jax
import jax.numpy as jnp
from jax import lax
from jax.experimental import pallas as pl
from jax.experimental.pallas import tpu as pltpu


def _forward_kernel(x_ref,       # (L*TB, 1)   f32, rows ordered (t, b) within the tile
                    w1_ref,      # (3, 32)     f32  conv1 weight [tap, c_out]
                    sc1_ref,     # (1, 32)     f32  folded bn1 scale
                    sh1_ref,     # (1, 32)     f32  folded bn1 shift (incl. conv1 bias)
                    w2_ref,      # (96, 64)    bf16 conv2 weight, rows tap*32 + c_in
                    sc2_ref,     # (1, 64)     f32
                    sh2_ref,     # (1, 64)     f32
                    wf1_ref,     # (64*L4,128) bf16 fc1 weight, rows ordered t*64 + c
                    bf1_ref,     # (1, 128)    f32
                    wf2_ref,     # (128, 128)  bf16 fc2 weight padded to 128 cols
                    bf2_ref,     # (1, 128)    f32  fc2 bias padded
                    o_ref):      # (TB, 128)   f32  padded logits (first 2 cols real)
    R1 = x_ref.shape[0]          # L * TB
    TB = o_ref.shape[0]
    L = R1 // TB
    L2, L4 = L // 2, L // 4
    R2 = L2 * TB

    # ---- conv1 (k=3, pad=1): rolls by one time-block (TB rows) + iota masks ---
    x = x_ref[...]                                                        # (R1, 1)
    idx1 = lax.broadcasted_iota(jnp.int32, (R1, 1), 0)
    xm = jnp.where(idx1 >= TB, pltpu.roll(x, shift=TB, axis=0), 0.0)          # x[t-1]
    xp = jnp.where(idx1 < R1 - TB, pltpu.roll(x, shift=R1 - TB, axis=0), 0.0)  # x[t+1]
    w1 = w1_ref[...]                                                      # (3, 32)
    y1 = xm * w1[0:1, :] + x * w1[1:2, :] + xp * w1[2:3, :]               # (R1, 32)

    # ---- bn1 (inference, folded) + relu ---------------------------------------
    y1 = jnp.maximum(y1 * sc1_ref[...] + sh1_ref[...], 0.0)

    # ---- maxpool1d(2): adjacent time-blocks, sublane-tile-aligned reshape -----
    y1 = y1.reshape(L2, 2 * TB, 32)
    p1 = jnp.maximum(y1[:, :TB, :], y1[:, TB:, :]).reshape(R2, 32)        # (R2, 32)

    # ---- conv2 (k=3, pad=1): three accumulating K=32 MXU dots (no concat) -----
    idx2 = lax.broadcasted_iota(jnp.int32, (R2, 1), 0)
    pm = jnp.where(idx2 >= TB, pltpu.roll(p1, shift=TB, axis=0), 0.0).astype(jnp.bfloat16)
    pp = jnp.where(idx2 < R2 - TB, pltpu.roll(p1, shift=R2 - TB, axis=0), 0.0).astype(jnp.bfloat16)
    pc = p1.astype(jnp.bfloat16)
    y2 = (jnp.dot(pm, w2_ref[0:32, :], preferred_element_type=jnp.float32)
          + jnp.dot(pc, w2_ref[32:64, :], preferred_element_type=jnp.float32)
          + jnp.dot(pp, w2_ref[64:96, :], preferred_element_type=jnp.float32))  # (R2, 64)

    # ---- bn2 (inference, folded) + relu ---------------------------------------
    y2 = jnp.maximum(y2 * sc2_ref[...] + sh2_ref[...], 0.0)

    # ---- maxpool1d(2) ----------------------------------------------------------
    y2 = y2.reshape(L4, 2 * TB, 64)
    p2 = jnp.maximum(y2[:, :TB, :], y2[:, TB:, :]).reshape(L4 * TB, 64)   # (R4, 64)

    # ---- fc1: per-time-chunk accumulation straight from the pooled layout -----
    # (no flatten repack; this is also the K-tiling of the fc1 weight).
    # TODO(synk): for very large L4 move this loop onto an "arbitrary" grid axis.
    h = jnp.zeros((TB, 128), jnp.float32)
    for t in range(L4):
        chunk = p2[t * TB:(t + 1) * TB, :].astype(jnp.bfloat16)           # (TB, 64)
        h = h + jnp.dot(chunk, wf1_ref[t * 64:(t + 1) * 64, :],
                        preferred_element_type=jnp.float32)
    h = jnp.maximum(h + bf1_ref[...], 0.0)                                # (TB, 128)

    # ---- fc2 (weight/bias zero-padded to 128 lanes -> unmasked 128-lane store)
    out = jnp.dot(h.astype(jnp.bfloat16), wf2_ref[...],
                  preferred_element_type=jnp.float32) + bf2_ref[...]
    o_ref[...] = out


def _invariant_spec(shape):
    """BlockSpec for a grid-invariant operand; single-buffered when supported."""
    index_map = lambda i: (0,) * len(shape)
    try:
        return pl.BlockSpec(shape, index_map, pipeline_mode=pl.Buffered(1))
    except (TypeError, AttributeError):        # older jax without pipeline_mode
        return pl.BlockSpec(shape, index_map)


def init_params(key, input_dim):
    ks = jax.random.split(key, 12)
    L4 = input_dim // 4
    conv_out = 64 * L4
    p = {
        "conv1_w": 0.2 * jax.random.normal(ks[0], (32, 1, 3), jnp.float32),
        "conv1_b": 0.1 * jax.random.normal(ks[1], (32,), jnp.float32),
        "bn1_gamma": 1.0 + 0.1 * jax.random.normal(ks[2], (32,), jnp.float32),
        "bn1_beta": 0.1 * jax.random.normal(ks[3], (32,), jnp.float32),
        "bn1_mean": 0.1 * jax.random.normal(ks[4], (32,), jnp.float32),
        "bn1_var": 1.0 + 0.1 * jnp.abs(jax.random.normal(ks[5], (32,), jnp.float32)),
        "conv2_w": 0.1 * jax.random.normal(ks[6], (64, 32, 3), jnp.float32),
        "conv2_b": 0.1 * jax.random.normal(ks[7], (64,), jnp.float32),
        "bn2_gamma": 1.0 + 0.1 * jax.random.normal(ks[8], (64,), jnp.float32),
        "bn2_beta": 0.1 * jax.random.normal(ks[9], (64,), jnp.float32),
        "bn2_mean": 0.1 * jax.random.normal(ks[10], (64,), jnp.float32),
        "bn2_var": 1.0 + 0.1 * jnp.abs(jax.random.normal(ks[11], (64,), jnp.float32)),
    }
    kf = jax.random.split(jax.random.fold_in(key, 123), 4)
    p["fc1_w"] = 0.05 * jax.random.normal(kf[0], (128, conv_out), jnp.float32)
    p["fc1_b"] = 0.05 * jax.random.normal(kf[1], (128,), jnp.float32)
    p["fc2_w"] = 0.05 * jax.random.normal(kf[2], (2, 128), jnp.float32)
    p["fc2_b"] = 0.05 * jax.random.normal(kf[3], (2,), jnp.float32)
    return p


def voice_gender_cnn_forward(x, params, *, batch_tile=128):
    """x: (B, input_dim) float32 -> logits (B, 2). Inference (dropout = identity)."""
    B, L = x.shape
    assert L % 4 == 0, "input_dim must be divisible by 4"
    L4 = L // 4
    eps = 1e-5

    def rup(a, m):
        return ((a + m - 1) // m) * m

    # --- batch-tile sizing: fill the MXU M dim, keep >=2 grid steps for v7x ----
    TB = rup(max(8, min(int(batch_tile), rup(B, 8))), 8)
    if rup(B, TB) // TB < 2 and TB > 8:
        TB = max(8, rup((TB + 1) // 2, 8))
    Bp = rup(B, TB)
    n_tiles = Bp // TB

    # --- fold conv bias + BatchNorm (inference) into per-channel scale/shift ---
    sc1 = params["bn1_gamma"] / jnp.sqrt(params["bn1_var"] + eps)
    sh1 = params["bn1_beta"] + sc1 * (params["conv1_b"] - params["bn1_mean"])
    sc2 = params["bn2_gamma"] / jnp.sqrt(params["bn2_var"] + eps)
    sh2 = params["bn2_beta"] + sc2 * (params["conv2_b"] - params["bn2_mean"])

    # --- weight re-layouts (MXU operands in bf16, f32 accumulation) ------------
    w1t = params["conv1_w"][:, 0, :].T                                   # (3, 32) f32
    w2_im2col = (jnp.transpose(params["conv2_w"], (2, 1, 0))             # (tap, c_in, c_out)
                 .reshape(3 * 32, 64).astype(jnp.bfloat16))              # (96, 64)
    # fc1 columns are in PyTorch flatten order (c*L4 + t); reorder to the
    # kernel's (t*64 + c) row order, transposed for x @ W.
    wf1 = (params["fc1_w"].reshape(128, 64, L4)
           .transpose(0, 2, 1)
           .reshape(128, 64 * L4).T).astype(jnp.bfloat16)                # (64*L4, 128)
    bf1 = params["fc1_b"][None, :].astype(jnp.float32)                   # (1, 128)
    wf2 = (jnp.zeros((128, 128), jnp.float32)
           .at[:, :2].set(params["fc2_w"].T)).astype(jnp.bfloat16)       # (128, 128) padded
    bf2 = jnp.zeros((1, 128), jnp.float32).at[0, :2].set(params["fc2_b"])

    # --- batch pad + time-major-within-tile row layout: row = t*TB + b ---------
    x_pad = jnp.zeros((Bp, L), jnp.float32).at[:B].set(x.astype(jnp.float32))
    x_rows = (x_pad.reshape(n_tiles, TB, L)
              .transpose(0, 2, 1)
              .reshape(n_tiles * L * TB, 1))

    # --- explicit VMEM budget (weights single-buffered, x/out double-buffered) -
    invariant_bytes = (w1t.size * 4 + 64 * 4 + w2_im2col.size * 2 + 128 * 4
                       + wf1.size * 2 + wf2.size * 2 + 2 * 128 * 4)
    stream_bytes = 2 * TB * L * 4 + 2 * TB * 128 * 4
    act_bytes = TB * L * (1 + 32 + 32 + 64 + 64 + 128) * 4
    vmem_limit = int(min(max(2 * (invariant_bytes + stream_bytes + act_bytes),
                             32 * 1024 * 1024), 48 * 1024 * 1024))

    out = pl.pallas_call(
        _forward_kernel,
        out_shape=jax.ShapeDtypeStruct((Bp, 128), jnp.float32),
        grid=(n_tiles,),
        in_specs=[
            pl.BlockSpec((L * TB, 1), lambda i: (i, 0)),      # x rows, per batch tile
            _invariant_spec((3, 32)),                         # conv1 weight [tap, c_out]
            _invariant_spec((1, 32)),                         # folded bn1 scale
            _invariant_spec((1, 32)),                         # folded bn1 shift
            _invariant_spec((96, 64)),                        # conv2 im2col weight
            _invariant_spec((1, 64)),                         # folded bn2 scale
            _invariant_spec((1, 64)),                         # folded bn2 shift
            _invariant_spec((64 * L4, 128)),                  # fc1 weight (t*64+c rows)
            _invariant_spec((1, 128)),                        # fc1 bias
            _invariant_spec((128, 128)),                      # fc2 weight (padded)
            _invariant_spec((1, 128)),                        # fc2 bias (padded)
        ],
        out_specs=pl.BlockSpec((TB, 128), lambda i: (i, 0)),  # lane-dense logits slab
        compiler_params=pltpu.CompilerParams(
            dimension_semantics=("parallel",),
            vmem_limit_bytes=vmem_limit),
    )(x_rows, w1t, sc1[None, :], sh1[None, :], w2_im2col, sc2[None, :], sh2[None, :],
      wf1, bf1, wf2, bf2)

    return out[:B, :2]


def _reference_forward(x, p):
    """Pure-JAX f32 reference of the PyTorch module in eval mode."""
    eps = 1e-5

    def bn(y, g, b, m, v):
        return ((y - m[None, :, None]) / jnp.sqrt(v[None, :, None] + eps)
                * g[None, :, None] + b[None, :, None])

    y = x[:, None, :]
    y = lax.conv_general_dilated(y, p["conv1_w"], (1,), [(1, 1)],
                                 dimension_numbers=("NCH", "OIH", "NCH"))
    y = y + p["conv1_b"][None, :, None]
    y = jax.nn.relu(bn(y, p["bn1_gamma"], p["bn1_beta"], p["bn1_mean"], p["bn1_var"]))
    y = jnp.max(y.reshape(y.shape[0], y.shape[1], -1, 2), axis=-1)
    y = lax.conv_general_dilated(y, p["conv2_w"], (1,), [(1, 1)],
                                 dimension_numbers=("NCH", "OIH", "NCH"))
    y = y + p["conv2_b"][None, :, None]
    y = jax.nn.relu(bn(y, p["bn2_gamma"], p["bn2_beta"], p["bn2_mean"], p["bn2_var"]))
    y = jnp.max(y.reshape(y.shape[0], y.shape[1], -1, 2), axis=-1)
    flat = y.reshape(y.shape[0], -1)                   # PyTorch channel-major flatten
    h = jax.nn.relu(flat @ p["fc1_w"].T + p["fc1_b"])
    return h @ p["fc2_w"].T + p["fc2_b"]


if __name__ == "__main__":
    key = jax.random.PRNGKey(0)
    input_dim = 16          # must be divisible by 4
    batch = 4

    pkey, xkey = jax.random.split(key)
    params = init_params(pkey, input_dim)
    x = jax.random.normal(xkey, (batch, input_dim), jnp.float32)

    logits = voice_gender_cnn_forward(x, params)
    jax.block_until_ready(logits)
    assert logits.shape == (batch, 2)
    assert bool(jnp.all(jnp.isfinite(logits)))

    ref = _reference_forward(x, params)
    err = float(jnp.max(jnp.abs(logits - ref)))
    assert err < 5e-2, f"kernel/reference mismatch: max abs err {err}"
    print("KERNEL_OK")
</pallas_src>

<mosaic_0001>
module attributes {stable_mosaic.version = 11 : i64} {
  func.func @_forward_kernel(%arg0: i32, %arg1: memref<128x1xf32, #tpu.memory_space<vmem>>, %arg2: memref<3x32xf32, #tpu.memory_space<vmem>>, %arg3: memref<1x32xf32, #tpu.memory_space<vmem>>, %arg4: memref<1x32xf32, #tpu.memory_space<vmem>>, %arg5: memref<96x64xbf16, #tpu.memory_space<vmem>>, %arg6: memref<1x64xf32, #tpu.memory_space<vmem>>, %arg7: memref<1x64xf32, #tpu.memory_space<vmem>>, %arg8: memref<256x128xbf16, #tpu.memory_space<vmem>>, %arg9: memref<1x128xf32, #tpu.memory_space<vmem>>, %arg10: memref<128x128xbf16, #tpu.memory_space<vmem>>, %arg11: memref<1x128xf32, #tpu.memory_space<vmem>>, %arg12: memref<8x128xf32, #tpu.memory_space<vmem>>) attributes {dimension_semantics = [#tpu.dimension_semantics<parallel>], iteration_bounds = array<i64: 1>, scalar_prefetch = 0 : i64, scratch_operands = 0 : i64, tpu.core_type = #tpu.core_type<tc>, window_params = [{transform_indices = @transform_0, window_bounds = array<i64: 128, 1>}, {pipeline_mode = #tpu.pipeline_mode<synchronous>, transform_indices = @transform_1, window_bounds = array<i64: 3, 32>}, {pipeline_mode = #tpu.pipeline_mode<synchronous>, transform_indices = @transform_2, window_bounds = array<i64: 1, 32>}, {pipeline_mode = #tpu.pipeline_mode<synchronous>, transform_indices = @transform_3, window_bounds = array<i64: 1, 32>}, {pipeline_mode = #tpu.pipeline_mode<synchronous>, transform_indices = @transform_4, window_bounds = array<i64: 96, 64>}, {pipeline_mode = #tpu.pipeline_mode<synchronous>, transform_indices = @transform_5, window_bounds = array<i64: 1, 64>}, {pipeline_mode = #tpu.pipeline_mode<synchronous>, transform_indices = @transform_6, window_bounds = array<i64: 1, 64>}, {pipeline_mode = #tpu.pipeline_mode<synchronous>, transform_indices = @transform_7, window_bounds = array<i64: 256, 128>}, {pipeline_mode = #tpu.pipeline_mode<synchronous>, transform_indices = @transform_8, window_bounds = array<i64: 1, 128>}, {pipeline_mode = #tpu.pipeline_mode<synchronous>, transform_indices = @transform_9, window_bounds = array<i64: 128, 128>}, {pipeline_mode = #tpu.pipeline_mode<synchronous>, transform_indices = @transform_10, window_bounds = array<i64: 1, 128>}, {transform_indices = @transform_11, window_bounds = array<i64: 8, 128>}]} {
    %c0 = arith.constant 0 : index
    %c0_0 = arith.constant 0 : index
    %0 = vector.load %arg1[%c0, %c0_0] : memref<128x1xf32, #tpu.memory_space<vmem>>, vector<128x1xf32>
    %1 = tpu.iota {dimensions = array<i32: 0>} : vector<128x1xi32>
    %c8_i32 = arith.constant 8 : i32
    %2 = vector.broadcast %c8_i32 : i32 to vector<128x1xi32>
    %3 = arith.cmpi sge, %1, %2 : vector<128x1xi32>
    %c8_i32_1 = arith.constant 8 : i32
    %4 = tpu.dynamic_rotate %0 by %c8_i32_1 dim 0 : vector<128x1xf32>, i32 -> vector<128x1xf32>
    %cst = arith.constant 0.000000e+00 : f32
    %5 = vector.broadcast %cst : f32 to vector<128x1xf32>
    %6 = arith.select %3, %4, %5 : vector<128x1xi1>, vector<128x1xf32>
    %c120_i32 = arith.constant 120 : i32
    %7 = vector.broadcast %c120_i32 : i32 to vector<128x1xi32>
    %8 = arith.cmpi slt, %1, %7 : vector<128x1xi32>
    %c120_i32_2 = arith.constant 120 : i32
    %9 = tpu.dynamic_rotate %0 by %c120_i32_2 dim 0 : vector<128x1xf32>, i32 -> vector<128x1xf32>
    %cst_3 = arith.constant 0.000000e+00 : f32
    %10 = vector.broadcast %cst_3 : f32 to vector<128x1xf32>
    %11 = arith.select %8, %9, %10 : vector<128x1xi1>, vector<128x1xf32>
    %c0_4 = arith.constant 0 : index
    %c0_5 = arith.constant 0 : index
    %12 = vector.load %arg2[%c0_4, %c0_5] : memref<3x32xf32, #tpu.memory_space<vmem>>, vector<3x32xf32>
    %13 = vector.extract_strided_slice %12 {offsets = [0, 0], sizes = [1, 32], strides = [1, 1]} : vector<3x32xf32> to vector<1x32xf32>
    %14 = vector.broadcast %6 : vector<128x1xf32> to vector<128x32xf32>
    %15 = vector.broadcast %13 : vector<1x32xf32> to vector<128x32xf32>
    %16 = arith.mulf %14, %15 : vector<128x32xf32>
    %17 = vector.extract_strided_slice %12 {offsets = [1, 0], sizes = [1, 32], strides = [1, 1]} : vector<3x32xf32> to vector<1x32xf32>
    %18 = vector.broadcast %0 : vector<128x1xf32> to vector<128x32xf32>
    %19 = vector.broadcast %17 : vector<1x32xf32> to vector<128x32xf32>
    %20 = arith.mulf %18, %19 : vector<128x32xf32>
    %21 = arith.addf %16, %20 : vector<128x32xf32>
    %22 = vector.extract_strided_slice %12 {offsets = [2, 0], sizes = [1, 32], strides = [1, 1]} : vector<3x32xf32> to vector<1x32xf32>
    %23 = vector.broadcast %11 : vector<128x1xf32> to vector<128x32xf32>
    %24 = vector.broadcast %22 : vector<1x32xf32> to vector<128x32xf32>
    %25 = arith.mulf %23, %24 : vector<128x32xf32>
    %26 = arith.addf %21, %25 : vector<128x32xf32>
    %c0_6 = arith.constant 0 : index
    %c0_7 = arith.constant 0 : index
    %27 = vector.load %arg3[%c0_6, %c0_7] : memref<1x32xf32, #tpu.memory_space<vmem>>, vector<1x32xf32>
    %28 = vector.broadcast %27 : vector<1x32xf32> to vector<128x32xf32>
    %29 = arith.mulf %26, %28 : vector<128x32xf32>
    %c0_8 = arith.constant 0 : index
    %c0_9 = arith.constant 0 : index
    %30 = vector.load %arg4[%c0_8, %c0_9] : memref<1x32xf32, #tpu.memory_space<vmem>>, vector<1x32xf32>
    %31 = vector.broadcast %30 : vector<1x32xf32> to vector<128x32xf32>
    %32 = arith.addf %29, %31 : vector<128x32xf32>
    %cst_10 = arith.constant 0.000000e+00 : f32
    %33 = vector.broadcast %cst_10 : f32 to vector<128x32xf32>
    %34 = arith.maximumf %32, %33 : vector<128x32xf32>
    %35 = vector.shape_cast %34 : vector<128x32xf32> to vector<8x16x32xf32>
    %36 = vector.extract_strided_slice %35 {offsets = [0, 0, 0], sizes = [8, 8, 32], strides = [1, 1, 1]} : vector<8x16x32xf32> to vector<8x8x32xf32>
    %37 = vector.extract_strided_slice %35 {offsets = [0, 8, 0], sizes = [8, 8, 32], strides = [1, 1, 1]} : vector<8x16x32xf32> to vector<8x8x32xf32>
    %38 = arith.maximumf %36, %37 : vector<8x8x32xf32>
    %39 = vector.shape_cast %38 : vector<8x8x32xf32> to vector<64x32xf32>
    %40 = tpu.iota {dimensions = array<i32: 0>} : vector<64x1xi32>
    %c8_i32_11 = arith.constant 8 : i32
    %41 = vector.broadcast %c8_i32_11 : i32 to vector<64x1xi32>
    %42 = arith.cmpi sge, %40, %41 : vector<64x1xi32>
    %c8_i32_12 = arith.constant 8 : i32
    %43 = tpu.dynamic_rotate %39 by %c8_i32_12 dim 0 : vector<64x32xf32>, i32 -> vector<64x32xf32>
    %cst_13 = arith.constant 0.000000e+00 : f32
    %44 = vector.shape_cast %42 : vector<64x1xi1> to vector<64x1xi1>
    %45 = vector.broadcast %44 : vector<64x1xi1> to vector<64x32xi1>
    %46 = vector.broadcast %cst_13 : f32 to vector<64x32xf32>
    %47 = arith.select %45, %43, %46 : vector<64x32xi1>, vector<64x32xf32>
    %48 = arith.truncf %47 : vector<64x32xf32> to vector<64x32xbf16>
    %c56_i32 = arith.constant 56 : i32
    %49 = vector.broadcast %c56_i32 : i32 to vector<64x1xi32>
    %50 = arith.cmpi slt, %40, %49 : vector<64x1xi32>
    %c56_i32_14 = arith.constant 56 : i32
    %51 = tpu.dynamic_rotate %39 by %c56_i32_14 dim 0 : vector<64x32xf32>, i32 -> vector<64x32xf32>
    %cst_15 = arith.constant 0.000000e+00 : f32
    %52 = vector.shape_cast %50 : vector<64x1xi1> to vector<64x1xi1>
    %53 = vector.broadcast %52 : vector<64x1xi1> to vector<64x32xi1>
    %54 = vector.broadcast %cst_15 : f32 to vector<64x32xf32>
    %55 = arith.select %53, %51, %54 : vector<64x32xi1>, vector<64x32xf32>
    %56 = arith.truncf %55 : vector<64x32xf32> to vector<64x32xbf16>
    %57 = arith.truncf %39 : vector<64x32xf32> to vector<64x32xbf16>
    %c0_16 = arith.constant 0 : index
    %c0_17 = arith.constant 0 : index
    %58 = vector.load %arg5[%c0_16, %c0_17] : memref<96x64xbf16, #tpu.memory_space<vmem>>, vector<32x64xbf16>
    %cst_18 = arith.constant dense<0.000000e+00> : vector<64x64xf32>
    %59 = tpu.matmul %48, %58, %cst_18 {dimension_numbers = #tpu.dot_dimension_numbers<[1], [0], [0], [1], [0, 0, 1, 1], [], []>} : vector<64x32xbf16>, vector<32x64xbf16>, vector<64x64xf32> -> vector<64x64xf32>
    %c32 = arith.constant 32 : index
    %c0_19 = arith.constant 0 : index
    %60 = vector.load %arg5[%c32, %c0_19] : memref<96x64xbf16, #tpu.memory_space<vmem>>, vector<32x64xbf16>
    %cst_20 = arith.constant dense<0.000000e+00> : vector<64x64xf32>
    %61 = tpu.matmul %57, %60, %cst_20 {dimension_numbers = #tpu.dot_dimension_numbers<[1], [0], [0], [1], [0, 0, 1, 1], [], []>} : vector<64x32xbf16>, vector<32x64xbf16>, vector<64x64xf32> -> vector<64x64xf32>
    %62 = arith.addf %59, %61 : vector<64x64xf32>
    %c64 = arith.constant 64 : index
    %c0_21 = arith.constant 0 : index
    %63 = vector.load %arg5[%c64, %c0_21] : memref<96x64xbf16, #tpu.memory_space<vmem>>, vector<32x64xbf16>
    %cst_22 = arith.constant dense<0.000000e+00> : vector<64x64xf32>
    %64 = tpu.matmul %56, %63, %cst_22 {dimension_numbers = #tpu.dot_dimension_numbers<[1], [0], [0], [1], [0, 0, 1, 1], [], []>} : vector<64x32xbf16>, vector<32x64xbf16>, vector<64x64xf32> -> vector<64x64xf32>
    %65 = arith.addf %62, %64 : vector<64x64xf32>
    %c0_23 = arith.constant 0 : index
    %c0_24 = arith.constant 0 : index
    %66 = vector.load %arg6[%c0_23, %c0_24] : memref<1x64xf32, #tpu.memory_space<vmem>>, vector<1x64xf32>
    %67 = vector.broadcast %66 : vector<1x64xf32> to vector<64x64xf32>
    %68 = arith.mulf %65, %67 : vector<64x64xf32>
    %c0_25 = arith.constant 0 : index
    %c0_26 = arith.constant 0 : index
    %69 = vector.load %arg7[%c0_25, %c0_26] : memref<1x64xf32, #tpu.memory_space<vmem>>, vector<1x64xf32>
    %70 = vector.broadcast %69 : vector<1x64xf32> to vector<64x64xf32>
    %71 = arith.addf %68, %70 : vector<64x64xf32>
    %cst_27 = arith.constant 0.000000e+00 : f32
    %72 = vector.broadcast %cst_27 : f32 to vector<64x64xf32>
    %73 = arith.maximumf %71, %72 : vector<64x64xf32>
    %74 = vector.shape_cast %73 : vector<64x64xf32> to vector<4x16x64xf32>
    %75 = vector.extract_strided_slice %74 {offsets = [0, 0, 0], sizes = [4, 8, 64], strides = [1, 1, 1]} : vector<4x16x64xf32> to vector<4x8x64xf32>
    %76 = vector.extract_strided_slice %74 {offsets = [0, 8, 0], sizes = [4, 8, 64], strides = [1, 1, 1]} : vector<4x16x64xf32> to vector<4x8x64xf32>
    %77 = arith.maximumf %75, %76 : vector<4x8x64xf32>
    %78 = vector.shape_cast %77 : vector<4x8x64xf32> to vector<32x64xf32>
    %cst_28 = arith.constant 0.000000e+00 : f32
    %79 = vector.broadcast %cst_28 : f32 to vector<8x128xf32>
    %80 = vector.extract_strided_slice %78 {offsets = [0, 0], sizes = [8, 64], strides = [1, 1]} : vector<32x64xf32> to vector<8x64xf32>
    %81 = arith.truncf %80 : vector<8x64xf32> to vector<8x64xbf16>
    %c0_29 = arith.constant 0 : index
    %c0_30 = arith.constant 0 : index
    %82 = vector.load %arg8[%c0_29, %c0_30] : memref<256x128xbf16, #tpu.memory_space<vmem>>, vector<64x128xbf16>
    %cst_31 = arith.constant dense<0.000000e+00> : vector<8x128xf32>
    %83 = tpu.matmul %81, %82, %cst_31 {dimension_numbers = #tpu.dot_dimension_numbers<[1], [0], [0], [1], [0, 0, 1, 1], [], []>} : vector<8x64xbf16>, vector<64x128xbf16>, vector<8x128xf32> -> vector<8x128xf32>
    %84 = arith.addf %79, %83 : vector<8x128xf32>
    %85 = vector.extract_strided_slice %78 {offsets = [8, 0], sizes = [8, 64], strides = [1, 1]} : vector<32x64xf32> to vector<8x64xf32>
    %86 = arith.truncf %85 : vector<8x64xf32> to vector<8x64xbf16>
    %c64_32 = arith.constant 64 : index
    %c0_33 = arith.constant 0 : index
    %87 = vector.load %arg8[%c64_32, %c0_33] : memref<256x128xbf16, #tpu.memory_space<vmem>>, vector<64x128xbf16>
    %cst_34 = arith.constant dense<0.000000e+00> : vector<8x128xf32>
    %88 = tpu.matmul %86, %87, %cst_34 {dimension_numbers = #tpu.dot_dimension_numbers<[1], [0], [0], [1], [0, 0, 1, 1], [], []>} : vector<8x64xbf16>, vector<64x128xbf16>, vector<8x128xf32> -> vector<8x128xf32>
    %89 = arith.addf %84, %88 : vector<8x128xf32>
    %90 = vector.extract_strided_slice %78 {offsets = [16, 0], sizes = [8, 64], strides = [1, 1]} : vector<32x64xf32> to vector<8x64xf32>
    %91 = arith.truncf %90 : vector<8x64xf32> to vector<8x64xbf16>
    %c128 = arith.constant 128 : index
    %c0_35 = arith.constant 0 : index
    %92 = vector.load %arg8[%c128, %c0_35] : memref<256x128xbf16, #tpu.memory_space<vmem>>, vector<64x128xbf16>
    %cst_36 = arith.constant dense<0.000000e+00> : vector<8x128xf32>
    %93 = tpu.matmul %91, %92, %cst_36 {dimension_numbers = #tpu.dot_dimension_numbers<[1], [0], [0], [1], [0, 0, 1, 1], [], []>} : vector<8x64xbf16>, vector<64x128xbf16>, vector<8x128xf32> -> vector<8x128xf32>
    %94 = arith.addf %89, %93 : vector<8x128xf32>
    %95 = vector.extract_strided_slice %78 {offsets = [24, 0], sizes = [8, 64], strides = [1, 1]} : vector<32x64xf32> to vector<8x64xf32>
    %96 = arith.truncf %95 : vector<8x64xf32> to vector<8x64xbf16>
    %c192 = arith.constant 192 : index
    %c0_37 = arith.constant 0 : index
    %97 = vector.load %arg8[%c192, %c0_37] : memref<256x128xbf16, #tpu.memory_space<vmem>>, vector<64x128xbf16>
    %cst_38 = arith.constant dense<0.000000e+00> : vector<8x128xf32>
    %98 = tpu.matmul %96, %97, %cst_38 {dimension_numbers = #tpu.dot_dimension_numbers<[1], [0], [0], [1], [0, 0, 1, 1], [], []>} : vector<8x64xbf16>, vector<64x128xbf16>, vector<8x128xf32> -> vector<8x128xf32>
    %99 = arith.addf %94, %98 : vector<8x128xf32>
    %c0_39 = arith.constant 0 : index
    %c0_40 = arith.constant 0 : index
    %100 = vector.load %arg9[%c0_39, %c0_40] : memref<1x128xf32, #tpu.memory_space<vmem>>, vector<1x128xf32>
    %101 = vector.broadcast %100 : vector<1x128xf32> to vector<8x128xf32>
    %102 = arith.addf %99, %101 : vector<8x128xf32>
    %cst_41 = arith.constant 0.000000e+00 : f32
    %103 = vector.broadcast %cst_41 : f32 to vector<8x128xf32>
    %104 = arith.maximumf %102, %103 : vector<8x128xf32>
    %105 = arith.truncf %104 : vector<8x128xf32> to vector<8x128xbf16>
    %c0_42 = arith.constant 0 : index
    %c0_43 = arith.constant 0 : index
    %106 = vector.load %arg10[%c0_42, %c0_43] : memref<128x128xbf16, #tpu.memory_space<vmem>>, vector<128x128xbf16>
    %cst_44 = arith.constant dense<0.000000e+00> : vector<8x128xf32>
    %107 = tpu.matmul %105, %106, %cst_44 {dimension_numbers = #tpu.dot_dimension_numbers<[1], [0], [0], [1], [0, 0, 1, 1], [], []>} : vector<8x128xbf16>, vector<128x128xbf16>, vector<8x128xf32> -> vector<8x128xf32>
    %c0_45 = arith.constant 0 : index
    %c0_46 = arith.constant 0 : index
    %108 = vector.load %arg11[%c0_45, %c0_46] : memref<1x128xf32, #tpu.memory_space<vmem>>, vector<1x128xf32>
    %109 = vector.broadcast %108 : vector<1x128xf32> to vector<8x128xf32>
    %110 = arith.addf %107, %109 : vector<8x128xf32>
    %c0_47 = arith.constant 0 : index
    %c0_48 = arith.constant 0 : index
    %111 = vector.load %arg12[%c0_47, %c0_48] : memref<8x128xf32, #tpu.memory_space<vmem>>, vector<8x128xf32>
    tpu.vector_store %arg12[%c0_47, %c0_48], %110 {strides = array<i32>} : memref<8x128xf32, #tpu.memory_space<vmem>>, vector<8x128xf32>,
    return
  }
  func.func @transform_0(%arg0: i32) -> (i32, i32) {
    %c0_i32 = arith.constant 0 : i32
    %c0_i32_0 = arith.constant 0 : i32
    return %arg0, %c0_i32 : i32, i32
  }
  func.func @transform_1(%arg0: i32) -> (i32, i32) {
    %c0_i32 = arith.constant 0 : i32
    %c0_i32_0 = arith.constant 0 : i32
    %c0_i32_1 = arith.constant 0 : i32
    return %c0_i32, %c0_i32_0 : i32, i32
  }
  func.func @transform_2(%arg0: i32) -> (i32, i32) {
    %c0_i32 = arith.constant 0 : i32
    %c0_i32_0 = arith.constant 0 : i32
    %c0_i32_1 = arith.constant 0 : i32
    return %c0_i32, %c0_i32_0 : i32, i32
  }
  func.func @transform_3(%arg0: i32) -> (i32, i32) {
    %c0_i32 = arith.constant 0 : i32
    %c0_i32_0 = arith.constant 0 : i32
    %c0_i32_1 = arith.constant 0 : i32
    return %c0_i32, %c0_i32_0 : i32, i32
  }
  func.func @transform_4(%arg0: i32) -> (i32, i32) {
    %c0_i32 = arith.constant 0 : i32
    %c0_i32_0 = arith.constant 0 : i32
    %c0_i32_1 = arith.constant 0 : i32
    return %c0_i32, %c0_i32_0 : i32, i32
  }
  func.func @transform_5(%arg0: i32) -> (i32, i32) {
    %c0_i32 = arith.constant 0 : i32
    %c0_i32_0 = arith.constant 0 : i32
    %c0_i32_1 = arith.constant 0 : i32
    return %c0_i32, %c0_i32_0 : i32, i32
  }
  func.func @transform_6(%arg0: i32) -> (i32, i32) {
    %c0_i32 = arith.constant 0 : i32
    %c0_i32_0 = arith.constant 0 : i32
    %c0_i32_1 = arith.constant 0 : i32
    return %c0_i32, %c0_i32_0 : i32, i32
  }
  func.func @transform_7(%arg0: i32) -> (i32, i32) {
    %c0_i32 = arith.constant 0 : i32
    %c0_i32_0 = arith.constant 0 : i32
    %c0_i32_1 = arith.constant 0 : i32
    return %c0_i32, %c0_i32_0 : i32, i32
  }
  func.func @transform_8(%arg0: i32) -> (i32, i32) {
    %c0_i32 = arith.constant 0 : i32
    %c0_i32_0 = arith.constant 0 : i32
    %c0_i32_1 = arith.constant 0 : i32
    return %c0_i32, %c0_i32_0 : i32, i32
  }
  func.func @transform_9(%arg0: i32) -> (i32, i32) {
    %c0_i32 = arith.constant 0 : i32
    %c0_i32_0 = arith.constant 0 : i32
    %c0_i32_1 = arith.constant 0 : i32
    return %c0_i32, %c0_i32_0 : i32, i32
  }
  func.func @transform_10(%arg0: i32) -> (i32, i32) {
    %c0_i32 = arith.constant 0 : i32
    %c0_i32_0 = arith.constant 0 : i32
    %c0_i32_1 = arith.constant 0 : i32
    return %c0_i32, %c0_i32_0 : i32, i32
  }
  func.func @transform_11(%arg0: i32) -> (i32, i32) {
    %c0_i32 = arith.constant 0 : i32
    %c0_i32_0 = arith.constant 0 : i32
    return %arg0, %c0_i32 : i32, i32
  }
}

</mosaic_0001>

<llo_original>
// kernel: tpu_custom_call.1
$region0: #{tpu_custom_call.1}
  #allocation0 [shape = 'u32[]', space=smem, size = 0x4, offset = 0x4, fixed_abs, tag = 'smem constant byte address 0x4 - core index']
  #allocation1 [shape = 'u32[144,128]{1,0:T(1,128)}', space=vmem, size = 0x12000, scoped, tag = 'internal scratch']
  %s0 = inlined_call_operand.vmem [shape: f32[128,1], index: 0, kind: input, shape index: {}]
  %s1 = inlined_call_operand.vmem [shape: f32[3,32], index: 1, kind: input, shape index: {}]
  %s2 = inlined_call_operand.vmem [shape: f32[1,32], index: 2, kind: input, shape index: {}]
  %s3 = inlined_call_operand.vmem [shape: f32[1,32], index: 3, kind: input, shape index: {}]
  %s4 = inlined_call_operand.vmem [shape: bf16[96,64], index: 4, kind: input, shape index: {}]
  %s5 = inlined_call_operand.vmem [shape: f32[1,64], index: 5, kind: input, shape index: {}]
  %s6 = inlined_call_operand.vmem [shape: f32[1,64], index: 6, kind: input, shape index: {}]
  %s7 = inlined_call_operand.vmem [shape: bf16[256,128], index: 7, kind: input, shape index: {}]
  %s8 = inlined_call_operand.vmem [shape: f32[1,128], index: 8, kind: input, shape index: {}]
  %s9 = inlined_call_operand.vmem [shape: bf16[128,128], index: 9, kind: input, shape index: {}]
  %s10 = inlined_call_operand.vmem [shape: f32[1,128], index: 10, kind: input, shape index: {}]
  %s11 = inlined_call_operand.hbm [shape: f32[8,128], index: 11, kind: output, shape index: {}]
  %s12 = sld [smem:[#allocation0]]
  $region54: #{tpu_custom_call.1} parent=0
    _
  %s14 = ssub.s32 1, %s12
  %s15 = scalar_select 0, %s14, %s12
  $region1: #{tpu_custom_call.1} parent=0
    #allocation2 [shape = 'u8[4096]{0}', space=vmem, size = 0x1000, scoped, tag = 'output window, operand 0, single buffered']
    #allocation3 [shape = 's32[1]{0}', space=sflag, size = 0x4, scoped, tag = 'scoped memory for tpu_custom_call.1']
    %16 = vsyncpa [#allocation3], 0
    // Predicated region
    $region2: #{tpu_custom_call.1} parent=1 // pred_check
      _
    $region3: #{tpu_custom_call.1} parent=1 // pred_check_branch
      %18 = sbr.rel (0) target = $region5
    $region4: #{tpu_custom_call.1} parent=1 // pred_region
      _
    $region5: #{tpu_custom_call.1} parent=1 // pred_fallthru
      _
    // Predicated region
    $region6: #{tpu_custom_call.1} parent=1 // pred_check
      _
    $region7: #{tpu_custom_call.1} parent=1 // pred_check_branch
      %20 = sbr.rel (0) target = $region9
    $region8: #{tpu_custom_call.1} parent=1 // pred_region
      _
    $region9: #{tpu_custom_call.1} parent=1 // pred_fallthru
      _
    // Predicated region
    $region10: #{tpu_custom_call.1} parent=1 // pred_check
      _
    $region11: #{tpu_custom_call.1} parent=1 // pred_check_branch
      %22 = sbr.rel (0) target = $region13
    $region12: #{tpu_custom_call.1} parent=1 // pred_region
      _
    $region13: #{tpu_custom_call.1} parent=1 // pred_fallthru
      _
    // Predicated region
    $region14: #{tpu_custom_call.1} parent=1 // pred_check
      _
    $region15: #{tpu_custom_call.1} parent=1 // pred_check_branch
      %24 = sbr.rel (0) target = $region17
    $region16: #{tpu_custom_call.1} parent=1 // pred_region
      _
    $region17: #{tpu_custom_call.1} parent=1 // pred_fallthru
      _
    // Predicated region
    $region18: #{tpu_custom_call.1} parent=1 // pred_check
      _
    $region19: #{tpu_custom_call.1} parent=1 // pred_check_branch
      %26 = sbr.rel (0) target = $region21
    $region20: #{tpu_custom_call.1} parent=1 // pred_region
      _
    $region21: #{tpu_custom_call.1} parent=1 // pred_fallthru
      _
    // Predicated region
    $region22: #{tpu_custom_call.1} parent=1 // pred_check
      _
    $region23: #{tpu_custom_call.1} parent=1 // pred_check_branch
      %28 = sbr.rel (0) target = $region25
    $region24: #{tpu_custom_call.1} parent=1 // pred_region
      _
    $region25: #{tpu_custom_call.1} parent=1 // pred_fallthru
      _
    // Predicated region
    $region26: #{tpu_custom_call.1} parent=1 // pred_check
      _
    $region27: #{tpu_custom_call.1} parent=1 // pred_check_branch
      %30 = sbr.rel (0) target = $region29
    $region28: #{tpu_custom_call.1} parent=1 // pred_region
      _
    $region29: #{tpu_custom_call.1} parent=1 // pred_fallthru
      _
    // Predicated region
    $region30: #{tpu_custom_call.1} parent=1 // pred_check
      _
    $region31: #{tpu_custom_call.1} parent=1 // pred_check_branch
      %32 = sbr.rel (0) target = $region33
    $region32: #{tpu_custom_call.1} parent=1 // pred_region
      _
    $region33: #{tpu_custom_call.1} parent=1 // pred_fallthru
      _
    // Predicated region
    $region34: #{tpu_custom_call.1} parent=1 // pred_check
      _
    $region35: #{tpu_custom_call.1} parent=1 // pred_check_branch
      %34 = sbr.rel (0) target = $region37
    $region36: #{tpu_custom_call.1} parent=1 // pred_region
      _
    $region37: #{tpu_custom_call.1} parent=1 // pred_fallthru
      _
    // Predicated region
    $region38: #{tpu_custom_call.1} parent=1 // pred_check
      _
    $region39: #{tpu_custom_call.1} parent=1 // pred_check_branch
      %36 = sbr.rel (0) target = $region41
    $region40: #{tpu_custom_call.1} parent=1 // pred_region
      _
    $region41: #{tpu_custom_call.1} parent=1 // pred_fallthru
      _
    // Predicated region
    $region42: #{tpu_custom_call.1} parent=1 // pred_check
      _
    $region43: #{tpu_custom_call.1} parent=1 // pred_check_branch
      %38 = sbr.rel (0) target = $region45
    $region44: #{tpu_custom_call.1} parent=1 // pred_region
      _
    $region45: #{tpu_custom_call.1} parent=1 // pred_fallthru
      _
    %v40 = vld [vmem:[%s0] sm:$0xff]
    %v41 = vld [vmem:[%s0 + $0x8] sm:$0xff]
    %v42 = vld [vmem:[%s0 + $0x10] sm:$0xff]
    %v43 = vld [vmem:[%s0 + $0x18] sm:$0xff]
    %v44 = vld [vmem:[%s0 + $0x20] sm:$0xff]
    %v45 = vld [vmem:[%s0 + $0x28] sm:$0xff]
    %v46 = vld [vmem:[%s0 + $0x30] sm:$0xff]
    %v47 = vld [vmem:[%s0 + $0x38] sm:$0xff]
    %v48 = vld [vmem:[%s0 + $0x40] sm:$0xff]
    %v49 = vld [vmem:[%s0 + $0x48] sm:$0xff]
    %v50 = vld [vmem:[%s0 + $0x50] sm:$0xff]
    %v51 = vld [vmem:[%s0 + $0x58] sm:$0xff]
    %v52 = vld [vmem:[%s0 + $0x60] sm:$0xff]
    %v53 = vld [vmem:[%s0 + $0x68] sm:$0xff]
    %v54 = vld [vmem:[%s0 + $0x70] sm:$0xff]
    %v55 = vld [vmem:[%s0 + $0x78] sm:$0xff]
    %v56 = vlaneseq
    %v57 = vshrl.u32 %v56, 7
    %v58 = vadd.s32 %v57, 8
    %v59 = vadd.s32 %v57, 16
    %v60 = vadd.s32 %v57, 24
    %v61 = vadd.s32 %v57, 32
    %v62 = vadd.s32 %v57, 40
    %v63 = vadd.s32 %v57, 48
    %v64 = vadd.s32 %v57, 56
    %v65 = vadd.s32 %v57, 64
    %v66 = vadd.s32 %v57, 72
    %v67 = vadd.s32 %v57, 80
    %v68 = vadd.s32 %v57, 88
    %v69 = vadd.s32 %v57, 96
    %v70 = vadd.s32 %v57, 104
    %v71 = vadd.s32 %v57, 112
    %v72 = vadd.s32 %v57, 120
    %vm73 = vcmp.ge.s32.totalorder %v57, 8
    %vm74 = vcmp.ge.s32.totalorder %v58, 8
    %vm75 = vcmp.ge.s32.totalorder %v59, 8
    %vm76 = vcmp.ge.s32.totalorder %v60, 8
    %vm77 = vcmp.ge.s32.totalorder %v61, 8
    %vm78 = vcmp.ge.s32.totalorder %v62, 8
    %vm79 = vcmp.ge.s32.totalorder %v63, 8
    %vm80 = vcmp.ge.s32.totalorder %v64, 8
    %vm81 = vcmp.ge.s32.totalorder %v65, 8
    %vm82 = vcmp.ge.s32.totalorder %v66, 8
    %vm83 = vcmp.ge.s32.totalorder %v67, 8
    %vm84 = vcmp.ge.s32.totalorder %v68, 8
    %vm85 = vcmp.ge.s32.totalorder %v69, 8
    %vm86 = vcmp.ge.s32.totalorder %v70, 8
    %vm87 = vcmp.ge.s32.totalorder %v71, 8
    %vm88 = vcmp.ge.s32.totalorder %v72, 8
    %v89 = vsel %vm73, %v55, 0.0
    %v90 = vsel %vm74, %v40, 0.0
    %v91 = vsel %vm75, %v41, 0.0
    %v92 = vsel %vm76, %v42, 0.0
    %v93 = vsel %vm77, %v43, 0.0
    %v94 = vsel %vm78, %v44, 0.0
    %v95 = vsel %vm79, %v45, 0.0
    %v96 = vsel %vm80, %v46, 0.0
    %v97 = vsel %vm81, %v47, 0.0
    %v98 = vsel %vm82, %v48, 0.0
    %v99 = vsel %vm83, %v49, 0.0
    %v100 = vsel %vm84, %v50, 0.0
    %v101 = vsel %vm85, %v51, 0.0
    %v102 = vsel %vm86, %v52, 0.0
    %v103 = vsel %vm87, %v53, 0.0
    %v104 = vsel %vm88, %v54, 0.0
    %vm105 = vcmp.lt.s32.totalorder %v57, 120
    %vm106 = vcmp.lt.s32.totalorder %v58, 120
    %vm107 = vcmp.lt.s32.totalorder %v59, 120
    %vm108 = vcmp.lt.s32.totalorder %v60, 120
    %vm109 = vcmp.lt.s32.totalorder %v61, 120
    %vm110 = vcmp.lt.s32.totalorder %v62, 120
    %vm111 = vcmp.lt.s32.totalorder %v63, 120
    %vm112 = vcmp.lt.s32.totalorder %v64, 120
    %vm113 = vcmp.lt.s32.totalorder %v65, 120
    %vm114 = vcmp.lt.s32.totalorder %v66, 120
    %vm115 = vcmp.lt.s32.totalorder %v67, 120
    %vm116 = vcmp.lt.s32.totalorder %v68, 120
    %vm117 = vcmp.lt.s32.totalorder %v69, 120
    %vm118 = vcmp.lt.s32.totalorder %v70, 120
    %vm119 = vcmp.lt.s32.totalorder %v71, 120
    %vm120 = vcmp.lt.s32.totalorder %v72, 120
    %v121 = vsel %vm105, %v41, 0.0
    %v122 = vsel %vm106, %v42, 0.0
    %v123 = vsel %vm107, %v43, 0.0
    %v124 = vsel %vm108, %v44, 0.0
    %v125 = vsel %vm109, %v45, 0.0
    %v126 = vsel %vm110, %v46, 0.0
    %v127 = vsel %vm111, %v47, 0.0
    %v128 = vsel %vm112, %v48, 0.0
    %v129 = vsel %vm113, %v49, 0.0
    %v130 = vsel %vm114, %v50, 0.0
    %v131 = vsel %vm115, %v51, 0.0
    %v132 = vsel %vm116, %v52, 0.0
    %v133 = vsel %vm117, %v53, 0.0
    %v134 = vsel %vm118, %v54, 0.0
    %v135 = vsel %vm119, %v55, 0.0
    %v136 = vsel %vm120, %v40, 0.0
    %v137 = vld [vmem:[%s1] sm:$0x7]
    %139 = vset.pattern.permute.xlu0 0
    %140 = vperm.xlu0 %139, %v89
    %v141 = vpop.permute.xlu0 %140
    %144 = vset.pattern.permute.xlu0 0
    %145 = vperm.xlu0 %144, %v90
    %v146 = vpop.permute.xlu0 %145
    %149 = vset.pattern.permute.xlu0 0
    %150 = vperm.xlu0 %149, %v91
    %v151 = vpop.permute.xlu0 %150
    %154 = vset.pattern.permute.xlu0 0
    %155 = vperm.xlu0 %154, %v92
    %v156 = vpop.permute.xlu0 %155
    %159 = vset.pattern.permute.xlu0 0
    %160 = vperm.xlu0 %159, %v93
    %v161 = vpop.permute.xlu0 %160
    %164 = vset.pattern.permute.xlu0 0
    %165 = vperm.xlu0 %164, %v94
    %v166 = vpop.permute.xlu0 %165
    %169 = vset.pattern.permute.xlu0 0
    %170 = vperm.xlu0 %169, %v95
    %v171 = vpop.permute.xlu0 %170
    %174 = vset.pattern.permute.xlu0 0
    %175 = vperm.xlu0 %174, %v96
    %v176 = vpop.permute.xlu0 %175
    %179 = vset.pattern.permute.xlu0 0
    %180 = vperm.xlu0 %179, %v97
    %v181 = vpop.permute.xlu0 %180
    %184 = vset.pattern.permute.xlu0 0
    %185 = vperm.xlu0 %184, %v98
    %v186 = vpop.permute.xlu0 %185
    %189 = vset.pattern.permute.xlu0 0
    %190 = vperm.xlu0 %189, %v99
    %v191 = vpop.permute.xlu0 %190
    %194 = vset.pattern.permute.xlu0 0
    %195 = vperm.xlu0 %194, %v100
    %v196 = vpop.permute.xlu0 %195
    %199 = vset.pattern.permute.xlu0 0
    %200 = vperm.xlu0 %199, %v101
    %v201 = vpop.permute.xlu0 %200
    %204 = vset.pattern.permute.xlu0 0
    %205 = vperm.xlu0 %204, %v102
    %v206 = vpop.permute.xlu0 %205
    %209 = vset.pattern.permute.xlu0 0
    %210 = vperm.xlu0 %209, %v103
    %v211 = vpop.permute.xlu0 %210
    %214 = vset.pattern.permute.xlu0 0
    %215 = vperm.xlu0 %214, %v104
    %v216 = vpop.permute.xlu0 %215
    %v218 = vlaneseq
    %v219 = vshrl.u32 %v218, 7
    %v220 = vsub.s32 0, %v219
    %v221 = vrot.slane %v137, %v220
    %v222 = vmul.f32 %v141, %v221
    %v223 = vmul.f32 %v146, %v221
    %v224 = vmul.f32 %v151, %v221
    %v225 = vmul.f32 %v156, %v221
    %v226 = vmul.f32 %v161, %v221
    %v227 = vmul.f32 %v166, %v221
    %v228 = vmul.f32 %v171, %v221
    %v229 = vmul.f32 %v176, %v221
    %v230 = vmul.f32 %v181, %v221
    %v231 = vmul.f32 %v186, %v221
    %v232 = vmul.f32 %v191, %v221
    %v233 = vmul.f32 %v196, %v221
    %v234 = vmul.f32 %v201, %v221
    %v235 = vmul.f32 %v206, %v221
    %v236 = vmul.f32 %v211, %v221
    %v237 = vmul.f32 %v216, %v221
    %239 = vset.pattern.permute.xlu0 0
    %240 = vperm.xlu0 %239, %v40
    %v241 = vpop.permute.xlu0 %240
    %244 = vset.pattern.permute.xlu0 0
    %245 = vperm.xlu0 %244, %v41
    %v246 = vpop.permute.xlu0 %245
    %249 = vset.pattern.permute.xlu0 0
    %250 = vperm.xlu0 %249, %v42
    %v251 = vpop.permute.xlu0 %250
    %254 = vset.pattern.permute.xlu0 0
    %255 = vperm.xlu0 %254, %v43
    %v256 = vpop.permute.xlu0 %255
    %259 = vset.pattern.permute.xlu0 0
    %260 = vperm.xlu0 %259, %v44
    %v261 = vpop.permute.xlu0 %260
    %264 = vset.pattern.permute.xlu0 0
    %265 = vperm.xlu0 %264, %v45
    %v266 = vpop.permute.xlu0 %265
    %269 = vset.pattern.permute.xlu0 0
    %270 = vperm.xlu0 %269, %v46
    %v271 = vpop.permute.xlu0 %270
    %274 = vset.pattern.permute.xlu0 0
    %275 = vperm.xlu0 %274, %v47
    %v276 = vpop.permute.xlu0 %275
    %279 = vset.pattern.permute.xlu0 0
    %280 = vperm.xlu0 %279, %v48
    %v281 = vpop.permute.xlu0 %280
    %284 = vset.pattern.permute.xlu0 0
    %285 = vperm.xlu0 %284, %v49
    %v286 = vpop.permute.xlu0 %285
    %289 = vset.pattern.permute.xlu0 0
    %290 = vperm.xlu0 %289, %v50
    %v291 = vpop.permute.xlu0 %290
    %294 = vset.pattern.permute.xlu0 0
    %295 = vperm.xlu0 %294, %v51
    %v296 = vpop.permute.xlu0 %295
    %299 = vset.pattern.permute.xlu0 0
    %300 = vperm.xlu0 %299, %v52
    %v301 = vpop.permute.xlu0 %300
    %304 = vset.pattern.permute.xlu0 0
    %305 = vperm.xlu0 %304, %v53
    %v306 = vpop.permute.xlu0 %305
    %309 = vset.pattern.permute.xlu0 0
    %310 = vperm.xlu0 %309, %v54
    %v311 = vpop.permute.xlu0 %310
    %314 = vset.pattern.permute.xlu0 0
    %315 = vperm.xlu0 %314, %v55
    %v316 = vpop.permute.xlu0 %315
    %v318 = vlaneseq
    %v319 = vshrl.u32 %v318, 7
    %v320 = vsub.s32 1, %v319
    %v321 = vrot.slane %v137, %v320
    %v322 = vmul.f32 %v241, %v321
    %v323 = vmul.f32 %v246, %v321
    %v324 = vmul.f32 %v251, %v321
    %v325 = vmul.f32 %v256, %v321
    %v326 = vmul.f32 %v261, %v321
    %v327 = vmul.f32 %v266, %v321
    %v328 = vmul.f32 %v271, %v321
    %v329 = vmul.f32 %v276, %v321
    %v330 = vmul.f32 %v281, %v321
    %v331 = vmul.f32 %v286, %v321
    %v332 = vmul.f32 %v291, %v321
    %v333 = vmul.f32 %v296, %v321
    %v334 = vmul.f32 %v301, %v321
    %v335 = vmul.f32 %v306, %v321
    %v336 = vmul.f32 %v311, %v321
    %v337 = vmul.f32 %v316, %v321
    %v338 = vadd.f32 %v222, %v322
    %v339 = vadd.f32 %v223, %v323
    %v340 = vadd.f32 %v224, %v324
    %v341 = vadd.f32 %v225, %v325
    %v342 = vadd.f32 %v226, %v326
    %v343 = vadd.f32 %v227, %v327
    %v344 = vadd.f32 %v228, %v328
    %v345 = vadd.f32 %v229, %v329
    %v346 = vadd.f32 %v230, %v330
    %v347 = vadd.f32 %v231, %v331
    %v348 = vadd.f32 %v232, %v332
    %v349 = vadd.f32 %v233, %v333
    %v350 = vadd.f32 %v234, %v334
    %v351 = vadd.f32 %v235, %v335
    %v352 = vadd.f32 %v236, %v336
    %v353 = vadd.f32 %v237, %v337
    %355 = vset.pattern.permute.xlu0 0
    %356 = vperm.xlu0 %355, %v121
    %v357 = vpop.permute.xlu0 %356
    %360 = vset.pattern.permute.xlu0 0
    %361 = vperm.xlu0 %360, %v122
    %v362 = vpop.permute.xlu0 %361
    %365 = vset.pattern.permute.xlu0 0
    %366 = vperm.xlu0 %365, %v123
    %v367 = vpop.permute.xlu0 %366
    %370 = vset.pattern.permute.xlu0 0
    %371 = vperm.xlu0 %370, %v124
    %v372 = vpop.permute.xlu0 %371
    %375 = vset.pattern.permute.xlu0 0
    %376 = vperm.xlu0 %375, %v125
    %v377 = vpop.permute.xlu0 %376
    %380 = vset.pattern.permute.xlu0 0
    %381 = vperm.xlu0 %380, %v126
    %v382 = vpop.permute.xlu0 %381
    %385 = vset.pattern.permute.xlu0 0
    %386 = vperm.xlu0 %385, %v127
    %v387 = vpop.permute.xlu0 %386
    %390 = vset.pattern.permute.xlu0 0
    %391 = vperm.xlu0 %390, %v128
    %v392 = vpop.permute.xlu0 %391
    %395 = vset.pattern.permute.xlu0 0
    %396 = vperm.xlu0 %395, %v129
    %v397 = vpop.permute.xlu0 %396
    %400 = vset.pattern.permute.xlu0 0
    %401 = vperm.xlu0 %400, %v130
    %v402 = vpop.permute.xlu0 %401
    %405 = vset.pattern.permute.xlu0 0
    %406 = vperm.xlu0 %405, %v131
    %v407 = vpop.permute.xlu0 %406
    %410 = vset.pattern.permute.xlu0 0
    %411 = vperm.xlu0 %410, %v132
    %v412 = vpop.permute.xlu0 %411
    %415 = vset.pattern.permute.xlu0 0
    %416 = vperm.xlu0 %415, %v133
    %v417 = vpop.permute.xlu0 %416
    %420 = vset.pattern.permute.xlu0 0
    %421 = vperm.xlu0 %420, %v134
    %v422 = vpop.permute.xlu0 %421
    %425 = vset.pattern.permute.xlu0 0
    %426 = vperm.xlu0 %425, %v135
    %v427 = vpop.permute.xlu0 %426
    %430 = vset.pattern.permute.xlu0 0
    %431 = vperm.xlu0 %430, %v136
    %v432 = vpop.permute.xlu0 %431
    %v434 = vlaneseq
    %v435 = vshrl.u32 %v434, 7
    %v436 = vsub.s32 2, %v435
    %v437 = vrot.slane %v137, %v436
    %v438 = vmul.f32 %v357, %v437
    %v439 = vmul.f32 %v362, %v437
    %v440 = vmul.f32 %v367, %v437
    %v441 = vmul.f32 %v372, %v437
    %v442 = vmul.f32 %v377, %v437
    %v443 = vmul.f32 %v382, %v437
    %v444 = vmul.f32 %v387, %v437
    %v445 = vmul.f32 %v392, %v437
    %v446 = vmul.f32 %v397, %v437
    %v447 = vmul.f32 %v402, %v437
    %v448 = vmul.f32 %v407, %v437
    %v449 = vmul.f32 %v412, %v437
    %v450 = vmul.f32 %v417, %v437
    %v451 = vmul.f32 %v422, %v437
    %v452 = vmul.f32 %v427, %v437
    %v453 = vmul.f32 %v432, %v437
    %v454 = vadd.f32 %v338, %v438
    %v455 = vadd.f32 %v339, %v439
    %v456 = vadd.f32 %v340, %v440
    %v457 = vadd.f32 %v341, %v441
    %v458 = vadd.f32 %v342, %v442
    %v459 = vadd.f32 %v343, %v443
    %v460 = vadd.f32 %v344, %v444
    %v461 = vadd.f32 %v345, %v445
    %v462 = vadd.f32 %v346, %v446
    %v463 = vadd.f32 %v347, %v447
    %v464 = vadd.f32 %v348, %v448
    %v465 = vadd.f32 %v349, %v449
    %v466 = vadd.f32 %v350, %v450
    %v467 = vadd.f32 %v351, %v451
    %v468 = vadd.f32 %v352, %v452
    %v469 = vadd.f32 %v353, %v453
    %v470 = vld [vmem:[%s2] sm:$0x1]
    %v472 = vlaneseq
    %v473 = vshrl.u32 %v472, 7
    %v474 = vsub.s32 0, %v473
    %v475 = vrot.slane %v470, %v474
    %v477 = vmul.f32 %v454, %v475
    %v478 = vmul.f32 %v455, %v475
    %v479 = vmul.f32 %v456, %v475
    %v480 = vmul.f32 %v457, %v475
    %v481 = vmul.f32 %v458, %v475
    %v482 = vmul.f32 %v459, %v475
    %v483 = vmul.f32 %v460, %v475
    %v484 = vmul.f32 %v461, %v475
    %v485 = vmul.f32 %v462, %v475
    %v486 = vmul.f32 %v463, %v475
    %v487 = vmul.f32 %v464, %v475
    %v488 = vmul.f32 %v465, %v475
    %v489 = vmul.f32 %v466, %v475
    %v490 = vmul.f32 %v467, %v475
    %v491 = vmul.f32 %v468, %v475
    %v492 = vmul.f32 %v469, %v475
    %v493 = vld [vmem:[%s3] sm:$0x1]
    %v495 = vlaneseq
    %v496 = vshrl.u32 %v495, 7
    %v497 = vsub.s32 0, %v496
    %v498 = vrot.slane %v493, %v497
    %v500 = vadd.f32 %v477, %v498
    %v501 = vadd.f32 %v478, %v498
    %v502 = vadd.f32 %v479, %v498
    %v503 = vadd.f32 %v480, %v498
    %v504 = vadd.f32 %v481, %v498
    %v505 = vadd.f32 %v482, %v498
    %v506 = vadd.f32 %v483, %v498
    %v507 = vadd.f32 %v484, %v498
    %v508 = vadd.f32 %v485, %v498
    %v509 = vadd.f32 %v486, %v498
    %v510 = vadd.f32 %v487, %v498
    %v511 = vadd.f32 %v488, %v498
    %v512 = vadd.f32 %v489, %v498
    %v513 = vadd.f32 %v490, %v498
    %v514 = vadd.f32 %v491, %v498
    %v515 = vadd.f32 %v492, %v498
    %v516 = vmax.f32 %v500, 0.0
    %v517 = vmax.f32 %v501, 0.0
    %v518 = vmax.f32 %v502, 0.0
    %v519 = vmax.f32 %v503, 0.0
    %v520 = vmax.f32 %v504, 0.0
    %v521 = vmax.f32 %v505, 0.0
    %v522 = vmax.f32 %v506, 0.0
    %v523 = vmax.f32 %v507, 0.0
    %v524 = vmax.f32 %v508, 0.0
    %v525 = vmax.f32 %v509, 0.0
    %v526 = vmax.f32 %v510, 0.0
    %v527 = vmax.f32 %v511, 0.0
    %v528 = vmax.f32 %v512, 0.0
    %v529 = vmax.f32 %v513, 0.0
    %v530 = vmax.f32 %v514, 0.0
    %v531 = vmax.f32 %v515, 0.0
    %v532 = vmax.f32 %v516, %v517
    %v533 = vmax.f32 %v518, %v519
    %v534 = vmax.f32 %v520, %v521
    %v535 = vmax.f32 %v522, %v523
    %v536 = vmax.f32 %v524, %v525
    %v537 = vmax.f32 %v526, %v527
    %v538 = vmax.f32 %v528, %v529
    %v539 = vmax.f32 %v530, %v531
    %v540 = vsel %vm73, 1, 0
    %v541 = vsel %vm74, 1, 0
    %v542 = vsel %vm75, 1, 0
    %v543 = vsel %vm76, 1, 0
    %v544 = vsel %vm77, 1, 0
    %v545 = vsel %vm78, 1, 0
    %v546 = vsel %vm79, 1, 0
    %v547 = vsel %vm80, 1, 0
    %vm548 = vcmp.eq.s32.totalorder %v540, 1
    %vm549 = vcmp.eq.s32.totalorder %v541, 1
    %vm550 = vcmp.eq.s32.totalorder %v542, 1
    %vm551 = vcmp.eq.s32.totalorder %v543, 1
    %vm552 = vcmp.eq.s32.totalorder %v544, 1
    %vm553 = vcmp.eq.s32.totalorder %v545, 1
    %vm554 = vcmp.eq.s32.totalorder %v546, 1
    %vm555 = vcmp.eq.s32.totalorder %v547, 1
    %v556 = vsel %vm548, %v539, 0.0
    %v557 = vsel %vm549, %v532, 0.0
    %v558 = vsel %vm550, %v533, 0.0
    %v559 = vsel %vm551, %v534, 0.0
    %v560 = vsel %vm552, %v535, 0.0
    %v561 = vsel %vm553, %v536, 0.0
    %v562 = vsel %vm554, %v537, 0.0
    %v563 = vsel %vm555, %v538, 0.0
    %v564 = vpack.c.bf16 %v557, %v556
    %v565 = vpack.c.bf16 %v559, %v558
    %v566 = vpack.c.bf16 %v561, %v560
    %v567 = vpack.c.bf16 %v563, %v562
    %vm568 = vcmp.lt.s32.totalorder %v57, 56
    %vm569 = vcmp.lt.s32.totalorder %v58, 56
    %vm570 = vcmp.lt.s32.totalorder %v59, 56
    %vm571 = vcmp.lt.s32.totalorder %v60, 56
    %vm572 = vcmp.lt.s32.totalorder %v61, 56
    %vm573 = vcmp.lt.s32.totalorder %v62, 56
    %vm574 = vcmp.lt.s32.totalorder %v63, 56
    %vm575 = vcmp.lt.s32.totalorder %v64, 56
    %v576 = vsel %vm568, 1, 0
    %v577 = vsel %vm569, 1, 0
    %v578 = vsel %vm570, 1, 0
    %v579 = vsel %vm571, 1, 0
    %v580 = vsel %vm572, 1, 0
    %v581 = vsel %vm573, 1, 0
    %v582 = vsel %vm574, 1, 0
    %v583 = vsel %vm575, 1, 0
    %vm584 = vcmp.eq.s32.totalorder %v576, 1
    %vm585 = vcmp.eq.s32.totalorder %v577, 1
    %vm586 = vcmp.eq.s32.totalorder %v578, 1
    %vm587 = vcmp.eq.s32.totalorder %v579, 1
    %vm588 = vcmp.eq.s32.totalorder %v580, 1
    %vm589 = vcmp.eq.s32.totalorder %v581, 1
    %vm590 = vcmp.eq.s32.totalorder %v582, 1
    %vm591 = vcmp.eq.s32.totalorder %v583, 1
    %v592 = vsel %vm584, %v533, 0.0
    %v593 = vsel %vm585, %v534, 0.0
    %v594 = vsel %vm586, %v535, 0.0
    %v595 = vsel %vm587, %v536, 0.0
    %v596 = vsel %vm588, %v537, 0.0
    %v597 = vsel %vm589, %v538, 0.0
    %v598 = vsel %vm590, %v539, 0.0
    %v599 = vsel %vm591, %v532, 0.0
    %v600 = vpack.c.bf16 %v593, %v592
    %v601 = vpack.c.bf16 %v595, %v594
    %v602 = vpack.c.bf16 %v597, %v596
    %v603 = vpack.c.bf16 %v599, %v598
    %v604 = vpack.c.bf16 %v533, %v532
    %v605 = vpack.c.bf16 %v535, %v534
    %v606 = vpack.c.bf16 %v537, %v536
    %v607 = vpack.c.bf16 %v539, %v538
    %v608 = vld [vmem:[%s4] sm:$0xf]
    %v609 = vld [vmem:[%s4 + $0x4] sm:$0xf]
    %v610 = vld [vmem:[%s4 + $0x8] sm:$0xf]
    %v611 = vld [vmem:[%s4 + $0xc] sm:$0xf]
    %v612 = vld [vmem:[%s4 + $0x10] sm:$0xf]
    %v613 = vld [vmem:[%s4 + $0x14] sm:$0xf]
    %v614 = vld [vmem:[%s4 + $0x18] sm:$0xf]
    %v615 = vld [vmem:[%s4 + $0x1c] sm:$0xf]
    %v620 = vunpack.c.l.b16 %v612
    %v621 = vunpack.c.l.b16 %v613
    %v622 = vunpack.c.l.b16 %v614
    %v623 = vunpack.c.l.b16 %v615
    %v624 = vpack.c.b16 %v621, %v620
    %v625 = vpack.c.b16 %v623, %v622
    %vm628 = vcmask 261120
    %v630 = vsel %vm628, %v604, 0
    %v633 = vsel %vm628, %v605, 0
    %v636 = vsel %vm628, %v606, 0
    %v639 = vsel %vm628, %v607, 0
    %641 = vmatprep.subr.bf16.mxu0 0
    %642 = vmatpush1.bf16.msra.mxu0 0
    %643 = vmatprep.subr.bf16.mxu0 0
    %644 = vmatpush1.bf16.msra.mxu0 0
    %645 = vmatprep.subr.bf16.mxu0 0
    %646 = vmatpush1.bf16.msra.mxu0 0
    %647 = vmatprep.subr.bf16.mxu0 0
    %648 = vmatpush1.bf16.msra.mxu0 0
    %649 = vmatprep.subr.bf16.mxu0 0
    %650 = vmatpush1.bf16.msra.mxu0 0
    %651 = vmatprep.subr.bf16.mxu0 0
    %652 = vmatpush1.bf16.msra.mxu0 0
    %653 = vmatprep.subr.bf16.mxu0 0
    %654 = vmatpush1.bf16.msra.mxu0 %v625
    %655 = vmatprep.subr.bf16.mxu0 0
    %656 = vmatpush1.bf16.msra.mxu0 %v624
    %657 = vmatprep.subr.bf16.mxu0 0
    %658 = vmatpush2.bf16.msra.mxu0 0
    %659 = vmatprep.subr.bf16.mxu0 0
    %660 = vmatpush2.bf16.msra.mxu0 0
    %661 = vmatprep.subr.bf16.mxu0 0
    %662 = vmatpush2.bf16.msra.mxu0 0
    %663 = vmatprep.subr.bf16.mxu0 0
    %664 = vmatpush2.bf16.msra.mxu0 0
    %665 = vmatprep.subr.bf16.mxu0 0
    %666 = vmatpush2.bf16.msra.mxu0 0
    %667 = vmatprep.subr.bf16.mxu0 0
    %668 = vmatpush2.bf16.msra.mxu0 0
    %669 = vmatprep.subr.bf16.mxu0 0
    %670 = vmatpush2.bf16.msra.mxu0 0
    %671 = vmatprep.subr.bf16.mxu0 0
    %672 = vmatpush2.bf16.msra.mxu0 0
    %673 = vmatprep.mubr.bf16.mxu0 0
    %674 = vmatmul.mubr.bf16.gmra.mxu0 %v630
    %v675 = vpop.f32.mrf.mxu0
    %v676 = vadd.f32 0.0, %v675
    %v677 = vpop.f32.mrf.mxu0
    %v678 = vpop.f32.mrf.mxu0
    %v679 = vadd.f32 0.0, %v678
    %v680 = vpop.f32.mrf.mxu0
    %681 = vmatprep.mubr.bf16.mxu0 0
    %682 = vmatmul.mubr.bf16.gmra.mxu0 %v633
    %v683 = vpop.f32.mrf.mxu0
    %v684 = vadd.f32 0.0, %v683
    %v685 = vpop.f32.mrf.mxu0
    %v686 = vpop.f32.mrf.mxu0
    %v687 = vadd.f32 0.0, %v686
    %v688 = vpop.f32.mrf.mxu0
    %689 = vmatprep.mubr.bf16.mxu0 0
    %690 = vmatmul.mubr.bf16.gmra.mxu0 %v636
    %v691 = vpop.f32.mrf.mxu0
    %v692 = vadd.f32 0.0, %v691
    %v693 = vpop.f32.mrf.mxu0
    %v694 = vpop.f32.mrf.mxu0
    %v695 = vadd.f32 0.0, %v694
    %v696 = vpop.f32.mrf.mxu0
    %697 = vmatprep.mubr.bf16.mxu0 0
    %698 = vmatmul.mubr.bf16.gmra.mxu0 %v639
    %v699 = vpop.f32.mrf.mxu0
    %v700 = vadd.f32 0.0, %v699
    %v701 = vpop.f32.mrf.mxu0
    %v702 = vpop.f32.mrf.mxu0
    %v703 = vadd.f32 0.0, %v702
    %v704 = vpop.f32.mrf.mxu0
    %705 = vdwg.mxu0
    %v710 = vunpack.c.l.b16 %v608
    %v711 = vunpack.c.l.b16 %v609
    %v712 = vunpack.c.l.b16 %v610
    %v713 = vunpack.c.l.b16 %v611
    %v714 = vpack.c.b16 %v711, %v710
    %v715 = vpack.c.b16 %v713, %v712
    %v719 = vsel %vm628, %v564, 0
    %v722 = vsel %vm628, %v565, 0
    %v725 = vsel %vm628, %v566, 0
    %v728 = vsel %vm628, %v567, 0
    %730 = vmatprep.subr.bf16.mxu0 0
    %731 = vmatpush1.bf16.msra.mxu0 0
    %732 = vmatprep.subr.bf16.mxu0 0
    %733 = vmatpush1.bf16.msra.mxu0 0
    %734 = vmatprep.subr.bf16.mxu0 0
    %735 = vmatpush1.bf16.msra.mxu0 0
    %736 = vmatprep.subr.bf16.mxu0 0
    %737 = vmatpush1.bf16.msra.mxu0 0
    %738 = vmatprep.subr.bf16.mxu0 0
    %739 = vmatpush1.bf16.msra.mxu0 0
    %740 = vmatprep.subr.bf16.mxu0 0
    %741 = vmatpush1.bf16.msra.mxu0 0
    %742 = vmatprep.subr.bf16.mxu0 0
    %743 = vmatpush1.bf16.msra.mxu0 %v715
    %744 = vmatprep.subr.bf16.mxu0 0
    %745 = vmatpush1.bf16.msra.mxu0 %v714
    %746 = vmatprep.subr.bf16.mxu0 0
    %747 = vmatpush2.bf16.msra.mxu0 0
    %748 = vmatprep.subr.bf16.mxu0 0
    %749 = vmatpush2.bf16.msra.mxu0 0
    %750 = vmatprep.subr.bf16.mxu0 0
    %751 = vmatpush2.bf16.msra.mxu0 0
    %752 = vmatprep.subr.bf16.mxu0 0
    %753 = vmatpush2.bf16.msra.mxu0 0
    %754 = vmatprep.subr.bf16.mxu0 0
    %755 = vmatpush2.bf16.msra.mxu0 0
    %756 = vmatprep.subr.bf16.mxu0 0
    %757 = vmatpush2.bf16.msra.mxu0 0
    %758 = vmatprep.subr.bf16.mxu0 0
    %759 = vmatpush2.bf16.msra.mxu0 0
    %760 = vmatprep.subr.bf16.mxu0 0
    %761 = vmatpush2.bf16.msra.mxu0 0
    %762 = vmatprep.mubr.bf16.mxu0 0
    %763 = vmatmul.mubr.bf16.gmra.mxu0 %v719
    %v764 = vpop.f32.mrf.mxu0
    %v765 = vadd.f32 %v676, %v764
    %v766 = vpop.f32.mrf.mxu0
    %v767 = vpop.f32.mrf.mxu0
    %v768 = vadd.f32 %v679, %v767
    %v769 = vpop.f32.mrf.mxu0
    %770 = vmatprep.mubr.bf16.mxu0 0
    %771 = vmatmul.mubr.bf16.gmra.mxu0 %v722
    %v772 = vpop.f32.mrf.mxu0
    %v773 = vadd.f32 %v684, %v772
    %v774 = vpop.f32.mrf.mxu0
    %v775 = vpop.f32.mrf.mxu0
    %v776 = vadd.f32 %v687, %v775
    %v777 = vpop.f32.mrf.mxu0
    %778 = vmatprep.mubr.bf16.mxu0 0
    %779 = vmatmul.mubr.bf16.gmra.mxu0 %v725
    %v780 = vpop.f32.mrf.mxu0
    %v781 = vadd.f32 %v692, %v780
    %v782 = vpop.f32.mrf.mxu0
    %v783 = vpop.f32.mrf.mxu0
    %v784 = vadd.f32 %v695, %v783
    %v785 = vpop.f32.mrf.mxu0
    %786 = vmatprep.mubr.bf16.mxu0 0
    %787 = vmatmul.mubr.bf16.gmra.mxu0 %v728
    %v788 = vpop.f32.mrf.mxu0
    %v789 = vadd.f32 %v700, %v788
    %v790 = vpop.f32.mrf.mxu0
    %v791 = vpop.f32.mrf.mxu0
    %v792 = vadd.f32 %v703, %v791
    %v793 = vpop.f32.mrf.mxu0
    %794 = vdwg.mxu0
    %v795 = vld [vmem:[%s4 + $0x20] sm:$0xf]
    %v796 = vld [vmem:[%s4 + $0x24] sm:$0xf]
    %v797 = vld [vmem:[%s4 + $0x28] sm:$0xf]
    %v798 = vld [vmem:[%s4 + $0x2c] sm:$0xf]
    %v803 = vunpack.c.l.b16 %v795
    %v804 = vunpack.c.l.b16 %v796
    %v805 = vunpack.c.l.b16 %v797
    %v806 = vunpack.c.l.b16 %v798
    %v807 = vpack.c.b16 %v804, %v803
    %v808 = vpack.c.b16 %v806, %v805
    %v812 = vsel %vm628, %v600, 0
    %v815 = vsel %vm628, %v601, 0
    %v818 = vsel %vm628, %v602, 0
    %v821 = vsel %vm628, %v603, 0
    %823 = vmatprep.subr.bf16.mxu0 0
    %824 = vmatpush1.bf16.msra.mxu0 0
    %825 = vmatprep.subr.bf16.mxu0 0
    %826 = vmatpush1.bf16.msra.mxu0 0
    %827 = vmatprep.subr.bf16.mxu0 0
    %828 = vmatpush1.bf16.msra.mxu0 0
    %829 = vmatprep.subr.bf16.mxu0 0
    %830 = vmatpush1.bf16.msra.mxu0 0
    %831 = vmatprep.subr.bf16.mxu0 0
    %832 = vmatpush1.bf16.msra.mxu0 0
    %833 = vmatprep.subr.bf16.mxu0 0
    %834 = vmatpush1.bf16.msra.mxu0 0
    %835 = vmatprep.subr.bf16.mxu0 0
    %836 = vmatpush1.bf16.msra.mxu0 %v808
    %837 = vmatprep.subr.bf16.mxu0 0
    %838 = vmatpush1.bf16.msra.mxu0 %v807
    %839 = vmatprep.subr.bf16.mxu0 0
    %840 = vmatpush2.bf16.msra.mxu0 0
    %841 = vmatprep.subr.bf16.mxu0 0
    %842 = vmatpush2.bf16.msra.mxu0 0
    %843 = vmatprep.subr.bf16.mxu0 0
    %844 = vmatpush2.bf16.msra.mxu0 0
    %845 = vmatprep.subr.bf16.mxu0 0
    %846 = vmatpush2.bf16.msra.mxu0 0
    %847 = vmatprep.subr.bf16.mxu0 0
    %848 = vmatpush2.bf16.msra.mxu0 0
    %849 = vmatprep.subr.bf16.mxu0 0
    %850 = vmatpush2.bf16.msra.mxu0 0
    %851 = vmatprep.subr.bf16.mxu0 0
    %852 = vmatpush2.bf16.msra.mxu0 0
    %853 = vmatprep.subr.bf16.mxu0 0
    %854 = vmatpush2.bf16.msra.mxu0 0
    %855 = vmatprep.mubr.bf16.mxu0 0
    %856 = vmatmul.mubr.bf16.gmra.mxu0 %v812
    %v857 = vpop.f32.mrf.mxu0
    %v858 = vadd.f32 0.0, %v857
    %v859 = vpop.f32.mrf.mxu0
    %v860 = vpop.f32.mrf.mxu0
    %v861 = vadd.f32 0.0, %v860
    %v862 = vpop.f32.mrf.mxu0
    %863 = vmatprep.mubr.bf16.mxu0 0
    %864 = vmatmul.mubr.bf16.gmra.mxu0 %v815
    %v865 = vpop.f32.mrf.mxu0
    %v866 = vadd.f32 0.0, %v865
    %v867 = vpop.f32.mrf.mxu0
    %v868 = vpop.f32.mrf.mxu0
    %v869 = vadd.f32 0.0, %v868
    %v870 = vpop.f32.mrf.mxu0
    %871 = vmatprep.mubr.bf16.mxu0 0
    %872 = vmatmul.mubr.bf16.gmra.mxu0 %v818
    %v873 = vpop.f32.mrf.mxu0
    %v874 = vadd.f32 0.0, %v873
    %v875 = vpop.f32.mrf.mxu0
    %v876 = vpop.f32.mrf.mxu0
    %v877 = vadd.f32 0.0, %v876
    %v878 = vpop.f32.mrf.mxu0
    %879 = vmatprep.mubr.bf16.mxu0 0
    %880 = vmatmul.mubr.bf16.gmra.mxu0 %v821
    %v881 = vpop.f32.mrf.mxu0
    %v882 = vadd.f32 0.0, %v881
    %v883 = vpop.f32.mrf.mxu0
    %v884 = vpop.f32.mrf.mxu0
    %v885 = vadd.f32 0.0, %v884
    %v886 = vpop.f32.mrf.mxu0
    %887 = vdwg.mxu0
    %v888 = vadd.f32 %v765, %v858
    %v889 = vadd.f32 %v768, %v861
    %v890 = vadd.f32 %v773, %v866
    %v891 = vadd.f32 %v776, %v869
    %v892 = vadd.f32 %v781, %v874
    %v893 = vadd.f32 %v784, %v877
    %v894 = vadd.f32 %v789, %v882
    %v895 = vadd.f32 %v792, %v885
    %v896 = vld [vmem:[%s5] sm:$0x1]
    %v898 = vlaneseq
    %v899 = vshrl.u32 %v898, 7
    %v900 = vsub.s32 0, %v899
    %v901 = vrot.slane %v896, %v900
    %v903 = vmul.f32 %v888, %v901
    %v904 = vmul.f32 %v889, %v901
    %v905 = vmul.f32 %v890, %v901
    %v906 = vmul.f32 %v891, %v901
    %v907 = vmul.f32 %v892, %v901
    %v908 = vmul.f32 %v893, %v901
    %v909 = vmul.f32 %v894, %v901
    %v910 = vmul.f32 %v895, %v901
    %v911 = vld [vmem:[%s6] sm:$0x1]
    %v913 = vlaneseq
    %v914 = vshrl.u32 %v913, 7
    %v915 = vsub.s32 0, %v914
    %v916 = vrot.slane %v911, %v915
    %v918 = vadd.f32 %v903, %v916
    %v919 = vadd.f32 %v904, %v916
    %v920 = vadd.f32 %v905, %v916
    %v921 = vadd.f32 %v906, %v916
    %v922 = vadd.f32 %v907, %v916
    %v923 = vadd.f32 %v908, %v916
    %v924 = vadd.f32 %v909, %v916
    %v925 = vadd.f32 %v910, %v916
    %v926 = vmax.f32 %v918, 0.0
    %v927 = vmax.f32 %v919, 0.0
    %v928 = vmax.f32 %v920, 0.0
    %v929 = vmax.f32 %v921, 0.0
    %v930 = vmax.f32 %v922, 0.0
    %v931 = vmax.f32 %v923, 0.0
    %v932 = vmax.f32 %v924, 0.0
    %v933 = vmax.f32 %v925, 0.0
    %v934 = vmax.f32 %v926, %v927
    %v935 = vmax.f32 %v928, %v929
    %v936 = vmax.f32 %v930, %v931
    %v937 = vmax.f32 %v932, %v933
    %v938 = vpack.c.bf16 %v934, %v934
    %v939 = vld [vmem:[%s7] sm:$0xf]
    %v940 = vld [vmem:[%s7 + $0x4] sm:$0xf]
    %v941 = vld [vmem:[%s7 + $0x8] sm:$0xf]
    %v942 = vld [vmem:[%s7 + $0xc] sm:$0xf]
    %v943 = vld [vmem:[%s7 + $0x10] sm:$0xf]
    %v944 = vld [vmem:[%s7 + $0x14] sm:$0xf]
    %v945 = vld [vmem:[%s7 + $0x18] sm:$0xf]
    %v946 = vld [vmem:[%s7 + $0x1c] sm:$0xf]
    %v947 = vpack.c.bf16 %v935, %v935
    %v948 = vld [vmem:[%s7 + $0x20] sm:$0xf]
    %v949 = vld [vmem:[%s7 + $0x24] sm:$0xf]
    %v950 = vld [vmem:[%s7 + $0x28] sm:$0xf]
    %v951 = vld [vmem:[%s7 + $0x2c] sm:$0xf]
    %v952 = vld [vmem:[%s7 + $0x30] sm:$0xf]
    %v953 = vld [vmem:[%s7 + $0x34] sm:$0xf]
    %v954 = vld [vmem:[%s7 + $0x38] sm:$0xf]
    %v955 = vld [vmem:[%s7 + $0x3c] sm:$0xf]
    %v964 = vunpack.c.l.b16 %v948
    %v965 = vunpack.c.l.b16 %v949
    %v966 = vunpack.c.l.b16 %v950
    %v967 = vunpack.c.l.b16 %v951
    %v968 = vunpack.c.l.b16 %v952
    %v969 = vunpack.c.l.b16 %v953
    %v970 = vunpack.c.l.b16 %v954
    %v971 = vunpack.c.l.b16 %v955
    %v972 = vpack.c.b16 %v965, %v964
    %v973 = vpack.c.b16 %v967, %v966
    %v974 = vpack.c.b16 %v969, %v968
    %v975 = vpack.c.b16 %v971, %v970
    %vm980 = vcmask 523264
    %v982 = vsel %vm980, %v947, 0
    %984 = vmatprep.subr.bf16.mxu0 0
    %985 = vmatpush1.bf16.msra.mxu0 0
    %986 = vmatprep.subr.bf16.mxu0 0
    %987 = vmatpush1.bf16.msra.mxu0 0
    %988 = vmatprep.subr.bf16.mxu0 0
    %989 = vmatpush1.bf16.msra.mxu0 0
    %990 = vmatprep.subr.bf16.mxu0 0
    %991 = vmatpush1.bf16.msra.mxu0 0
    %992 = vmatprep.subr.bf16.mxu0 0
    %993 = vmatpush1.bf16.msra.mxu0 %v975
    %994 = vmatprep.subr.bf16.mxu0 0
    %995 = vmatpush1.bf16.msra.mxu0 %v974
    %996 = vmatprep.subr.bf16.mxu0 0
    %997 = vmatpush1.bf16.msra.mxu0 %v973
    %998 = vmatprep.subr.bf16.mxu0 0
    %999 = vmatpush1.bf16.msra.mxu0 %v972
    %1000 = vmatprep.subr.bf16.mxu0 0
    %1001 = vmatpush2.bf16.msra.mxu0 0
    %1002 = vmatprep.subr.bf16.mxu0 0
    %1003 = vmatpush2.bf16.msra.mxu0 0
    %1004 = vmatprep.subr.bf16.mxu0 0
    %1005 = vmatpush2.bf16.msra.mxu0 0
    %1006 = vmatprep.subr.bf16.mxu0 0
    %1007 = vmatpush2.bf16.msra.mxu0 0
    %1008 = vmatprep.subr.bf16.mxu0 0
    %1009 = vmatpush2.bf16.msra.mxu0 0
    %1010 = vmatprep.subr.bf16.mxu0 0
    %1011 = vmatpush2.bf16.msra.mxu0 0
    %1012 = vmatprep.subr.bf16.mxu0 0
    %1013 = vmatpush2.bf16.msra.mxu0 0
    %1014 = vmatprep.subr.bf16.mxu0 0
    %1015 = vmatpush2.bf16.msra.mxu0 0
    %1016 = vmatprep.mubr.bf16.mxu0 0
    %1017 = vmatmul.mubr.bf16.gmra.mxu0 %v982
    %v1018 = vpop.f32.mrf.mxu0
    %v1019 = vadd.f32 0.0, %v1018
    %v1020 = vpop.f32.mrf.mxu0
    %v1021 = vpop.f32.mrf.mxu0
    %v1022 = vpop.f32.mrf.mxu0
    %1023 = vdwg.mxu0
    %v1032 = vunpack.c.l.b16 %v939
    %v1033 = vunpack.c.l.b16 %v940
    %v1034 = vunpack.c.l.b16 %v941
    %v1035 = vunpack.c.l.b16 %v942
    %v1036 = vunpack.c.l.b16 %v943
    %v1037 = vunpack.c.l.b16 %v944
    %v1038 = vunpack.c.l.b16 %v945
    %v1039 = vunpack.c.l.b16 %v946
    %v1040 = vpack.c.b16 %v1033, %v1032
    %v1041 = vpack.c.b16 %v1035, %v1034
    %v1042 = vpack.c.b16 %v1037, %v1036
    %v1043 = vpack.c.b16 %v1039, %v1038
    %v1049 = vsel %vm980, %v938, 0
    %1051 = vmatprep.subr.bf16.mxu0 0
    %1052 = vmatpush1.bf16.msra.mxu0 0
    %1053 = vmatprep.subr.bf16.mxu0 0
    %1054 = vmatpush1.bf16.msra.mxu0 0
    %1055 = vmatprep.subr.bf16.mxu0 0
    %1056 = vmatpush1.bf16.msra.mxu0 0
    %1057 = vmatprep.subr.bf16.mxu0 0
    %1058 = vmatpush1.bf16.msra.mxu0 0
    %1059 = vmatprep.subr.bf16.mxu0 0
    %1060 = vmatpush1.bf16.msra.mxu0 %v1043
    %1061 = vmatprep.subr.bf16.mxu0 0
    %1062 = vmatpush1.bf16.msra.mxu0 %v1042
    %1063 = vmatprep.subr.bf16.mxu0 0
    %1064 = vmatpush1.bf16.msra.mxu0 %v1041
    %1065 = vmatprep.subr.bf16.mxu0 0
    %1066 = vmatpush1.bf16.msra.mxu0 %v1040
    %1067 = vmatprep.subr.bf16.mxu0 0
    %1068 = vmatpush2.bf16.msra.mxu0 0
    %1069 = vmatprep.subr.bf16.mxu0 0
    %1070 = vmatpush2.bf16.msra.mxu0 0
    %1071 = vmatprep.subr.bf16.mxu0 0
    %1072 = vmatpush2.bf16.msra.mxu0 0
    %1073 = vmatprep.subr.bf16.mxu0 0
    %1074 = vmatpush2.bf16.msra.mxu0 0
    %1075 = vmatprep.subr.bf16.mxu0 0
    %1076 = vmatpush2.bf16.msra.mxu0 0
    %1077 = vmatprep.subr.bf16.mxu0 0
    %1078 = vmatpush2.bf16.msra.mxu0 0
    %1079 = vmatprep.subr.bf16.mxu0 0
    %1080 = vmatpush2.bf16.msra.mxu0 0
    %1081 = vmatprep.subr.bf16.mxu0 0
    %1082 = vmatpush2.bf16.msra.mxu0 0
    %1083 = vmatprep.mubr.bf16.mxu0 0
    %1084 = vmatmul.mubr.bf16.gmra.mxu0 %v1049
    %v1085 = vpop.f32.mrf.mxu0
    %v1086 = vadd.f32 %v1019, %v1085
    %v1087 = vpop.f32.mrf.mxu0
    %v1088 = vpop.f32.mrf.mxu0
    %v1089 = vpop.f32.mrf.mxu0
    %1090 = vdwg.mxu0
    %v1091 = vpack.c.bf16 %v936, %v936
    %v1092 = vld [vmem:[%s7 + $0x40] sm:$0xf]
    %v1093 = vld [vmem:[%s7 + $0x44] sm:$0xf]
    %v1094 = vld [vmem:[%s7 + $0x48] sm:$0xf]
    %v1095 = vld [vmem:[%s7 + $0x4c] sm:$0xf]
    %v1096 = vld [vmem:[%s7 + $0x50] sm:$0xf]
    %v1097 = vld [vmem:[%s7 + $0x54] sm:$0xf]
    %v1098 = vld [vmem:[%s7 + $0x58] sm:$0xf]
    %v1099 = vld [vmem:[%s7 + $0x5c] sm:$0xf]
    %v1108 = vunpack.c.l.b16 %v1092
    %v1109 = vunpack.c.l.b16 %v1093
    %v1110 = vunpack.c.l.b16 %v1094
    %v1111 = vunpack.c.l.b16 %v1095
    %v1112 = vunpack.c.l.b16 %v1096
    %v1113 = vunpack.c.l.b16 %v1097
    %v1114 = vunpack.c.l.b16 %v1098
    %v1115 = vunpack.c.l.b16 %v1099
    %v1116 = vpack.c.b16 %v1109, %v1108
    %v1117 = vpack.c.b16 %v1111, %v1110
    %v1118 = vpack.c.b16 %v1113, %v1112
    %v1119 = vpack.c.b16 %v1115, %v1114
    %v1125 = vsel %vm980, %v1091, 0
    %1127 = vmatprep.subr.bf16.mxu0 0
    %1128 = vmatpush1.bf16.msra.mxu0 0
    %1129 = vmatprep.subr.bf16.mxu0 0
    %1130 = vmatpush1.bf16.msra.mxu0 0
    %1131 = vmatprep.subr.bf16.mxu0 0
    %1132 = vmatpush1.bf16.msra.mxu0 0
    %1133 = vmatprep.subr.bf16.mxu0 0
    %1134 = vmatpush1.bf16.msra.mxu0 0
    %1135 = vmatprep.subr.bf16.mxu0 0
    %1136 = vmatpush1.bf16.msra.mxu0 %v1119
    %1137 = vmatprep.subr.bf16.mxu0 0
    %1138 = vmatpush1.bf16.msra.mxu0 %v1118
    %1139 = vmatprep.subr.bf16.mxu0 0
    %1140 = vmatpush1.bf16.msra.mxu0 %v1117
    %1141 = vmatprep.subr.bf16.mxu0 0
    %1142 = vmatpush1.bf16.msra.mxu0 %v1116
    %1143 = vmatprep.subr.bf16.mxu0 0
    %1144 = vmatpush2.bf16.msra.mxu0 0
    %1145 = vmatprep.subr.bf16.mxu0 0
    %1146 = vmatpush2.bf16.msra.mxu0 0
    %1147 = vmatprep.subr.bf16.mxu0 0
    %1148 = vmatpush2.bf16.msra.mxu0 0
    %1149 = vmatprep.subr.bf16.mxu0 0
    %1150 = vmatpush2.bf16.msra.mxu0 0
    %1151 = vmatprep.subr.bf16.mxu0 0
    %1152 = vmatpush2.bf16.msra.mxu0 0
    %1153 = vmatprep.subr.bf16.mxu0 0
    %1154 = vmatpush2.bf16.msra.mxu0 0
    %1155 = vmatprep.subr.bf16.mxu0 0
    %1156 = vmatpush2.bf16.msra.mxu0 0
    %1157 = vmatprep.subr.bf16.mxu0 0
    %1158 = vmatpush2.bf16.msra.mxu0 0
    %1159 = vmatprep.mubr.bf16.mxu0 0
    %1160 = vmatmul.mubr.bf16.gmra.mxu0 %v1125
    %v1161 = vpop.f32.mrf.mxu0
    %v1162 = vadd.f32 0.0, %v1161
    %v1163 = vpop.f32.mrf.mxu0
    %v1164 = vpop.f32.mrf.mxu0
    %v1165 = vpop.f32.mrf.mxu0
    %1166 = vdwg.mxu0
    %v1167 = vadd.f32 %v1086, %v1162
    %v1168 = vpack.c.bf16 %v937, %v937
    %v1169 = vld [vmem:[%s7 + $0x60] sm:$0xf]
    %v1170 = vld [vmem:[%s7 + $0x64] sm:$0xf]
    %v1171 = vld [vmem:[%s7 + $0x68] sm:$0xf]
    %v1172 = vld [vmem:[%s7 + $0x6c] sm:$0xf]
    %v1173 = vld [vmem:[%s7 + $0x70] sm:$0xf]
    %v1174 = vld [vmem:[%s7 + $0x74] sm:$0xf]
    %v1175 = vld [vmem:[%s7 + $0x78] sm:$0xf]
    %v1176 = vld [vmem:[%s7 + $0x7c] sm:$0xf]
    %v1185 = vunpack.c.l.b16 %v1169
    %v1186 = vunpack.c.l.b16 %v1170
    %v1187 = vunpack.c.l.b16 %v1171
    %v1188 = vunpack.c.l.b16 %v1172
    %v1189 = vunpack.c.l.b16 %v1173
    %v1190 = vunpack.c.l.b16 %v1174
    %v1191 = vunpack.c.l.b16 %v1175
    %v1192 = vunpack.c.l.b16 %v1176
    %v1193 = vpack.c.b16 %v1186, %v1185
    %v1194 = vpack.c.b16 %v1188, %v1187
    %v1195 = vpack.c.b16 %v1190, %v1189
    %v1196 = vpack.c.b16 %v1192, %v1191
    %v1202 = vsel %vm980, %v1168, 0
    %1204 = vmatprep.subr.bf16.mxu0 0
    %1205 = vmatpush1.bf16.msra.mxu0 0
    %1206 = vmatprep.subr.bf16.mxu0 0
    %1207 = vmatpush1.bf16.msra.mxu0 0
    %1208 = vmatprep.subr.bf16.mxu0 0
    %1209 = vmatpush1.bf16.msra.mxu0 0
    %1210 = vmatprep.subr.bf16.mxu0 0
    %1211 = vmatpush1.bf16.msra.mxu0 0
    %1212 = vmatprep.subr.bf16.mxu0 0
    %1213 = vmatpush1.bf16.msra.mxu0 %v1196
    %1214 = vmatprep.subr.bf16.mxu0 0
    %1215 = vmatpush1.bf16.msra.mxu0 %v1195
    %1216 = vmatprep.subr.bf16.mxu0 0
    %1217 = vmatpush1.bf16.msra.mxu0 %v1194
    %1218 = vmatprep.subr.bf16.mxu0 0
    %1219 = vmatpush1.bf16.msra.mxu0 %v1193
    %1220 = vmatprep.subr.bf16.mxu0 0
    %1221 = vmatpush2.bf16.msra.mxu0 0
    %1222 = vmatprep.subr.bf16.mxu0 0
    %1223 = vmatpush2.bf16.msra.mxu0 0
    %1224 = vmatprep.subr.bf16.mxu0 0
    %1225 = vmatpush2.bf16.msra.mxu0 0
    %1226 = vmatprep.subr.bf16.mxu0 0
    %1227 = vmatpush2.bf16.msra.mxu0 0
    %1228 = vmatprep.subr.bf16.mxu0 0
    %1229 = vmatpush2.bf16.msra.mxu0 0
    %1230 = vmatprep.subr.bf16.mxu0 0
    %1231 = vmatpush2.bf16.msra.mxu0 0
    %1232 = vmatprep.subr.bf16.mxu0 0
    %1233 = vmatpush2.bf16.msra.mxu0 0
    %1234 = vmatprep.subr.bf16.mxu0 0
    %1235 = vmatpush2.bf16.msra.mxu0 0
    %1236 = vmatprep.mubr.bf16.mxu0 0
    %1237 = vmatmul.mubr.bf16.gmra.mxu0 %v1202
    %v1238 = vpop.f32.mrf.mxu0
    %v1239 = vadd.f32 0.0, %v1238
    %v1240 = vpop.f32.mrf.mxu0
    %v1241 = vpop.f32.mrf.mxu0
    %v1242 = vpop.f32.mrf.mxu0
    %1243 = vdwg.mxu0
    %v1244 = vadd.f32 %v1167, %v1239
    %v1245 = vld [vmem:[%s8] sm:$0x1]
    %v1247 = vlaneseq
    %v1248 = vshrl.u32 %v1247, 7
    %v1249 = vsub.s32 0, %v1248
    %v1250 = vrot.slane %v1245, %v1249
    %v1252 = vadd.f32 %v1244, %v1250
    %v1253 = vmax.f32 %v1252, 0.0
    %v1254 = vpack.c.bf16 %v1253, %v1253
    %v1255 = vld [vmem:[%s9] sm:$0xf]
    %v1256 = vld [vmem:[%s9 + $0x4] sm:$0xf]
    %v1257 = vld [vmem:[%s9 + $0x8] sm:$0xf]
    %v1258 = vld [vmem:[%s9 + $0xc] sm:$0xf]
    %v1259 = vld [vmem:[%s9 + $0x10] sm:$0xf]
    %v1260 = vld [vmem:[%s9 + $0x14] sm:$0xf]
    %v1261 = vld [vmem:[%s9 + $0x18] sm:$0xf]
    %v1262 = vld [vmem:[%s9 + $0x1c] sm:$0xf]
    %v1263 = vld [vmem:[%s9 + $0x20] sm:$0xf]
    %v1264 = vld [vmem:[%s9 + $0x24] sm:$0xf]
    %v1265 = vld [vmem:[%s9 + $0x28] sm:$0xf]
    %v1266 = vld [vmem:[%s9 + $0x2c] sm:$0xf]
    %v1267 = vld [vmem:[%s9 + $0x30] sm:$0xf]
    %v1268 = vld [vmem:[%s9 + $0x34] sm:$0xf]
    %v1269 = vld [vmem:[%s9 + $0x38] sm:$0xf]
    %v1270 = vld [vmem:[%s9 + $0x3c] sm:$0xf]
    %v1271 = vld [vmem:[%s10] sm:$0x1]
    %v1273 = vlaneseq
    %v1274 = vshrl.u32 %v1273, 7
    %v1275 = vsub.s32 0, %v1274
    %v1276 = vrot.slane %v1271, %v1275
    %v1294 = vunpack.c.l.b16 %v1255
    %v1295 = vunpack.c.l.b16 %v1256
    %v1296 = vunpack.c.l.b16 %v1257
    %v1297 = vunpack.c.l.b16 %v1258
    %v1298 = vunpack.c.l.b16 %v1259
    %v1299 = vunpack.c.l.b16 %v1260
    %v1300 = vunpack.c.l.b16 %v1261
    %v1301 = vunpack.c.l.b16 %v1262
    %v1302 = vunpack.c.l.b16 %v1263
    %v1303 = vunpack.c.l.b16 %v1264
    %v1304 = vunpack.c.l.b16 %v1265
    %v1305 = vunpack.c.l.b16 %v1266
    %v1306 = vunpack.c.l.b16 %v1267
    %v1307 = vunpack.c.l.b16 %v1268
    %v1308 = vunpack.c.l.b16 %v1269
    %v1309 = vunpack.c.l.b16 %v1270
    %v1310 = vpack.c.b16 %v1295, %v1294
    %v1311 = vpack.c.b16 %v1297, %v1296
    %v1312 = vpack.c.b16 %v1299, %v1298
    %v1313 = vpack.c.b16 %v1301, %v1300
    %v1314 = vpack.c.b16 %v1303, %v1302
    %v1315 = vpack.c.b16 %v1305, %v1304
    %v1316 = vpack.c.b16 %v1307, %v1306
    %v1317 = vpack.c.b16 %v1309, %v1308
    %1326 = vmatprep.subr.bf16.mxu0 0
    %1327 = vmatpush1.bf16.msra.mxu0 %v1317
    %1328 = vmatprep.subr.bf16.mxu0 0
    %1329 = vmatpush1.bf16.msra.mxu0 %v1316
    %1330 = vmatprep.subr.bf16.mxu0 0
    %1331 = vmatpush1.bf16.msra.mxu0 %v1315
    %1332 = vmatprep.subr.bf16.mxu0 0
    %1333 = vmatpush1.bf16.msra.mxu0 %v1314
    %1334 = vmatprep.subr.bf16.mxu0 0
    %1335 = vmatpush1.bf16.msra.mxu0 %v1313
    %1336 = vmatprep.subr.bf16.mxu0 0
    %1337 = vmatpush1.bf16.msra.mxu0 %v1312
    %1338 = vmatprep.subr.bf16.mxu0 0
    %1339 = vmatpush1.bf16.msra.mxu0 %v1311
    %1340 = vmatprep.subr.bf16.mxu0 0
    %1341 = vmatpush1.bf16.msra.mxu0 %v1310
    %1342 = vmatprep.subr.bf16.mxu0 0
    %1343 = vmatpush2.bf16.msra.mxu0 0
    %1344 = vmatprep.subr.bf16.mxu0 0
    %1345 = vmatpush2.bf16.msra.mxu0 0
    %1346 = vmatprep.subr.bf16.mxu0 0
    %1347 = vmatpush2.bf16.msra.mxu0 0
    %1348 = vmatprep.subr.bf16.mxu0 0
    %1349 = vmatpush2.bf16.msra.mxu0 0
    %1350 = vmatprep.subr.bf16.mxu0 0
    %1351 = vmatpush2.bf16.msra.mxu0 0
    %1352 = vmatprep.subr.bf16.mxu0 0
    %1353 = vmatpush2.bf16.msra.mxu0 0
    %1354 = vmatprep.subr.bf16.mxu0 0
    %1355 = vmatpush2.bf16.msra.mxu0 0
    %1356 = vmatprep.subr.bf16.mxu0 0
    %1357 = vmatpush2.bf16.msra.mxu0 0
    %1358 = vmatprep.mubr.bf16.mxu0 0
    %1359 = vmatmul.mubr.bf16.gmra.mxu0 %v1254
    %v1360 = vpop.f32.mrf.mxu0
    %v1361 = vadd.f32 %v1276, %v1360
    %v1362 = vpop.f32.mrf.mxu0
    %v1363 = vpop.f32.mrf.mxu0
    %v1364 = vpop.f32.mrf.mxu0
    %1365 = vdwg.mxu0
    %1366 = vst [vmem:[#allocation2] sm:$0xff] %v1361
    // Predicated region
    $region46: #{tpu_custom_call.1} parent=1 // pred_check
      _
    $region47: #{tpu_custom_call.1} parent=1 // pred_check_branch
      %1368 = sbr.rel (0) target = $region49
    $region48: #{tpu_custom_call.1} parent=1 // pred_region
      %s1370 = ssub.s32 128, 128
      %1371 = vsyncadd [#allocation3], %s1370
      %s1373 = sshll.u32 [#allocation2], 4
      %s1374 = int_to_ptr.vmem [resolvable:$true] %s1373
      %1376 = dma.vmem_to_hbm [thread:$0]  %s1374, 128, %s11, [#allocation3]
    $region49: #{tpu_custom_call.1} parent=1 // pred_fallthru
      _
    // Predicated region
    $region50: #{tpu_custom_call.1} parent=1 // pred_check
      _
    $region51: #{tpu_custom_call.1} parent=1 // pred_check_branch
      %1378 = sbr.rel (0) target = $region53
    $region52: #{tpu_custom_call.1} parent=1 // pred_region
      %1379 = dma.done [#allocation3], 128
    $region53: #{tpu_custom_call.1} parent=1 // pred_fallthru
      _
    %1380 = vsyncpa [#allocation3], 1

</llo_original>
